<compile_context>
chip_gen: v7x
topology: tpu7x:2x2x1
jax: 0.10.0
libtpu: 0.0.40
codegen_flags: <defaults>
</compile_context>

<pallas_src>
import functools
import numpy as np
import jax
import jax.numpy as jnp
from jax.experimental import pallas as pl
from jax.experimental.pallas import tpu as pltpu

HIDDEN = 512
ENC_IN = 256          # 64 conv + 50 dir + 100 act + 42 zero pad -> lane-dense GRU input


def _round_up(x, m):
    return (x + m - 1) // m * m


def _batch_blocks(B):
    """Pad batch and split into <=2 blocks (v7x: both TensorCores run the GRU)."""
    Bp = _round_up(B, 8)
    if Bp >= 16:
        Bp = _round_up(Bp, 16)
        nb = 2
    else:
        nb = 1
    return Bp, nb, Bp // nb


def _pick_time_chunk(T, bb):
    """Largest chunk in {8,16,32} that minimizes time padding, with chunk*bb <= 1024
    so the fused (chunk*bb, 3H) f32 gx block stays well inside v7x's 64 MiB VMEM."""
    cap = max(8, 1024 // bb)
    best_c, best_key = 8, None
    for c in (8, 16, 32):
        if c > cap:
            continue
        key = (_round_up(T, c), -c)
        if best_key is None or key < best_key:
            best_key, best_c = key, c
    return best_c


# -------------------- dense (scattered) conv weight matrices --------------------
def _conv1_dense_weight(w1):
    """(16,3,2,2) conv1 weight -> (147, 576) over the flattened 3x7x7 input.
    Columns ordered (a, b, pi, pj, ch) so maxpool(2,2) = max over four 144-lane blocks."""
    rows, cols, widx = [], [], []
    for a in range(2):
        for b in range(2):
            for pi in range(3):
                for pj in range(3):
                    for ch in range(16):
                        col = ((a * 2 + b) * 9 + pi * 3 + pj) * 16 + ch
                        for c in range(3):
                            for ki in range(2):
                                for kj in range(2):
                                    rows.append(c * 49 + (2 * pi + a + ki) * 7
                                                + (2 * pj + b + kj))
                                    cols.append(col)
                                    widx.append(((ch * 3 + c) * 2 + ki) * 2 + kj)
    vals = w1.reshape(-1)[np.asarray(widx)]
    return jnp.zeros((147, 576), jnp.float32).at[np.asarray(rows),
                                                 np.asarray(cols)].set(vals)


def _conv2_dense_weight(w2):
    """(32,16,2,2) -> (144,128): rows (pi,pj,ch16), cols (oi,oj,ch32)."""
    w2t = jnp.transpose(w2, (2, 3, 1, 0))                        # (ki,kj,ch,ch2)
    dense = jnp.zeros((3, 3, 16, 2, 2, 32), jnp.float32)
    for oi in range(2):
        for oj in range(2):
            dense = dense.at[oi:oi + 2, oj:oj + 2, :, oi, oj, :].set(w2t)
    return dense.reshape(144, 128)


def _conv3_dense_weight(w3):
    """(64,32,2,2) -> (128,64): rows (ki,kj,ch32), cols ch64."""
    return jnp.transpose(w3, (2, 3, 1, 0)).reshape(128, 64)


# ------------------- fused conv tower + embedding-concat kernel -------------------
def _enc_input_kernel(obs_ref, dir_ref, act_ref, w1_ref, b1_ref, w2_ref, b2_ref,
                      w3_ref, b3_ref, o_ref, *, rows):
    x = obs_ref[...].reshape(rows, 147).astype(jnp.bfloat16)      # in-kernel cast
    # conv1 (+bias, ReLU) as one dense GEMM; columns ordered (a,b,pi,pj,ch)
    y1 = jnp.dot(x, w1_ref[...], preferred_element_type=jnp.float32) + b1_ref[...]
    y1 = jnp.maximum(y1, 0.0)                                     # (rows, 576)
    # 2x2 max-pool == elementwise max over the four 144-wide (a,b) lane blocks
    pooled = jnp.maximum(jnp.maximum(y1[:, 0:144], y1[:, 144:288]),
                         jnp.maximum(y1[:, 288:432], y1[:, 432:576]))
    # conv2 (+ReLU) and conv3 (+ReLU) as single dense GEMMs
    y2 = jnp.dot(pooled.astype(jnp.bfloat16), w2_ref[...],
                 preferred_element_type=jnp.float32) + b2_ref[...]
    y2 = jnp.maximum(y2, 0.0)                                     # (rows, 128)
    y3 = jnp.dot(y2.astype(jnp.bfloat16), w3_ref[...],
                 preferred_element_type=jnp.float32) + b3_ref[...]
    y3 = jnp.maximum(y3, 0.0)                                     # (rows, 64)
    # fuse concat([obs_enc, dir_emb, act_emb]) and pad to a lane-dense 256-wide slab
    out = jnp.concatenate(
        [y3.astype(jnp.bfloat16),
         dir_ref[...].reshape(rows, -1),
         act_ref[...].reshape(rows, -1),
         jnp.zeros((rows, ENC_IN - 214), jnp.bfloat16)], axis=-1)
    o_ref[...] = out.reshape(o_ref.shape)


def encoder_inputs(params, obs_tm, dirs_tm, acts_tm):
    """obs_tm: (Tp,Bp,147) f32; dirs_tm/acts_tm: (Tp,Bp) int32 (time-major, padded).
    Returns the (Tp,Bp,256) bf16 GRU input slab."""
    Tp, Bp, _ = obs_tm.shape
    dirs_e = jnp.take(params["dir_emb"].astype(jnp.bfloat16), dirs_tm, axis=0)
    acts_e = jnp.take(params["act_emb"].astype(jnp.bfloat16), acts_tm, axis=0)

    w1 = _conv1_dense_weight(params["conv1_w"]).astype(jnp.bfloat16)
    w2 = _conv2_dense_weight(params["conv2_w"]).astype(jnp.bfloat16)
    w3 = _conv3_dense_weight(params["conv3_w"]).astype(jnp.bfloat16)
    b1 = jnp.tile(params["conv1_b"], 36).reshape(1, 576)
    b2 = jnp.tile(params["conv2_b"], 4).reshape(1, 128)
    b3 = params["conv3_b"].reshape(1, 64)

    tc = 1
    for d in range(Tp, 0, -1):                # largest divisor of Tp with <=1024 rows/step
        if Tp % d == 0 and d * Bp <= 1024:
            tc = d
            break
    rows = tc * Bp

    return pl.pallas_call(
        functools.partial(_enc_input_kernel, rows=rows),
        grid=(Tp // tc,),
        in_specs=[
            pl.BlockSpec((tc, Bp, 147), lambda t: (t, 0, 0)),
            pl.BlockSpec((tc, Bp, 50), lambda t: (t, 0, 0)),
            pl.BlockSpec((tc, Bp, 100), lambda t: (t, 0, 0)),
            pl.BlockSpec((147, 576), lambda t: (0, 0)),
            pl.BlockSpec((1, 576), lambda t: (0, 0)),
            pl.BlockSpec((144, 128), lambda t: (0, 0)),
            pl.BlockSpec((1, 128), lambda t: (0, 0)),
            pl.BlockSpec((128, 64), lambda t: (0, 0)),
            pl.BlockSpec((1, 64), lambda t: (0, 0)),
        ],
        out_specs=pl.BlockSpec((tc, Bp, ENC_IN), lambda t: (t, 0, 0)),
        out_shape=jax.ShapeDtypeStruct((Tp, Bp, ENC_IN), jnp.bfloat16),
        compiler_params=pltpu.CompilerParams(dimension_semantics=("parallel",)),
    )(obs_tm, dirs_e, acts_e, w1, b1, w2, b2, w3, b3)


# --------------------------------- fused GRU kernel ---------------------------------
def _gru_kernel(len_ref, x_ref, wih_ref, bih_ref, whh_ref, bhh_ref, h0_ref, *refs,
                chunk, hidden, collect_all):
    if collect_all:
        hall_ref, hlast_ref, h_scr = refs
    else:
        hlast_ref, h_scr = refs
        hall_ref = None
    H = hidden
    bb = h0_ref.shape[0]
    t_blk = pl.program_id(1)

    @pl.when(t_blk == 0)
    def _():
        h_scr[...] = h0_ref[...]

    lens = len_ref[...]                                           # (bb, 1) int32
    # fused input-gate GEMM for the whole time chunk: (chunk*bb, Din) @ (Din, 3H)
    gx_all = jnp.dot(x_ref[...].reshape(chunk * bb, -1), wih_ref[...],
                     preferred_element_type=jnp.float32) + bih_ref[...]
    bhh = bhh_ref[...]
    whh = whh_ref[...]
    for step in range(chunk):                                     # unrolled recurrence
        h = h_scr[...]
        gh = jnp.dot(h.astype(jnp.bfloat16), whh,
                     preferred_element_type=jnp.float32) + bhh    # (bb, 3H) f32
        gx = gx_all[step * bb:(step + 1) * bb]
        r = jax.nn.sigmoid(gx[:, 0:H] + gh[:, 0:H])
        z = jax.nn.sigmoid(gx[:, H:2 * H] + gh[:, H:2 * H])
        n = jnp.tanh(gx[:, 2 * H:3 * H] + r * gh[:, 2 * H:3 * H])
        h_new = (1.0 - z) * n + z * h
        t_glob = t_blk * chunk + step
        h_upd = jnp.where(t_glob < lens, h_new, h)                # freeze past seq end
        h_scr[...] = h_upd
        if collect_all:
            hall_ref[step] = h_upd.astype(hall_ref.dtype)

    @pl.when(t_blk == pl.num_programs(1) - 1)
    def _():
        hlast_ref[...] = h_scr[...]


def gru_forward(x_tm, w_ih, b_ih, w_hh, b_hh, h0, lens, *, chunk, batch_block,
                collect_all):
    """x_tm: (Tp,Bp,Din) bf16 time-major input.  Returns (h_all or None, h_last)."""
    Tp, Bp, Din = x_tm.shape
    H = h0.shape[1]
    G = 3 * H
    nb = Bp // batch_block
    nt = Tp // chunk

    out_specs, out_shape = [], []
    if collect_all:
        out_specs.append(pl.BlockSpec((chunk, batch_block, H), lambda b, t: (t, b, 0)))
        out_shape.append(jax.ShapeDtypeStruct((Tp, Bp, H), jnp.bfloat16))
    out_specs.append(pl.BlockSpec((batch_block, H), lambda b, t: (b, 0)))
    out_shape.append(jax.ShapeDtypeStruct((Bp, H), jnp.float32))

    outs = pl.pallas_call(
        functools.partial(_gru_kernel, chunk=chunk, hidden=H, collect_all=collect_all),
        grid=(nb, nt),
        in_specs=[
            pl.BlockSpec((batch_block, 1), lambda b, t: (b, 0)),          # lengths
            pl.BlockSpec((chunk, batch_block, Din), lambda b, t: (t, b, 0)),
            pl.BlockSpec((Din, G), lambda b, t: (0, 0)),                  # W_ih^T bf16
            pl.BlockSpec((1, G), lambda b, t: (0, 0)),                    # b_ih
            pl.BlockSpec((H, G), lambda b, t: (0, 0)),                    # W_hh^T bf16
            pl.BlockSpec((1, G), lambda b, t: (0, 0)),                    # b_hh
            pl.BlockSpec((batch_block, H), lambda b, t: (b, 0)),          # h0
        ],
        out_specs=out_specs,
        out_shape=out_shape,
        scratch_shapes=[pltpu.VMEM((batch_block, H), jnp.float32)],
        compiler_params=pltpu.CompilerParams(
            dimension_semantics=("parallel", "arbitrary"),
            vmem_limit_bytes=32 * 1024 * 1024),
    )(lens, x_tm, w_ih.astype(jnp.bfloat16), b_ih.reshape(1, G),
      w_hh.astype(jnp.bfloat16), b_hh.reshape(1, G), h0)
    if collect_all:
        return outs[0], outs[1]
    return None, outs[0]


# -------------------------------- tiled matmul + bias --------------------------------
def _mm_bias_nk1_kernel(x_ref, w_ref, b_ref, o_ref, *, activation):
    y = jnp.dot(x_ref[...].astype(jnp.bfloat16), w_ref[...].astype(jnp.bfloat16),
                preferred_element_type=jnp.float32) + b_ref[...]
    if activation == "relu":
        y = jnp.maximum(y, 0.0)
    o_ref[...] = y


def _mm_bias_kernel(x_ref, w_ref, b_ref, o_ref, acc_ref, *, activation, nk):
    k = pl.program_id(2)

    @pl.when(k == 0)
    def _():
        acc_ref[...] = jnp.zeros_like(acc_ref)

    acc_ref[...] += jnp.dot(x_ref[...].astype(jnp.bfloat16),
                            w_ref[...].astype(jnp.bfloat16),
                            preferred_element_type=jnp.float32)

    @pl.when(k == nk - 1)
    def _():
        y = acc_ref[...] + b_ref[...]
        if activation == "relu":
            y = jnp.maximum(y, 0.0)
        o_ref[...] = y


def matmul_bias(x, w, b, activation="none", tm_cap=256, tn_cap=512, tk_cap=512):
    """y = act(x @ w + b); operands cast to bf16 INSIDE the kernel, f32 accumulation."""
    M, K = x.shape
    N = w.shape[1]
    tm = min(tm_cap, _round_up(M, 8))
    tk = min(tk_cap, _round_up(K, 128))
    tn = min(tn_cap, _round_up(N, 128))
    Mp, Kp, Np = _round_up(M, tm), _round_up(K, tk), _round_up(N, tn)
    xp = jnp.pad(x, ((0, Mp - M), (0, Kp - K)))
    wp = jnp.pad(w, ((0, Kp - K), (0, Np - N)))
    bp = jnp.pad(b.reshape(1, N).astype(jnp.float32), ((0, 0), (0, Np - N)))
    nk = Kp // tk
    if nk == 1:                                      # fast path: no accumulator scratch
        out = pl.pallas_call(
            functools.partial(_mm_bias_nk1_kernel, activation=activation),
            grid=(Mp // tm, Np // tn),
            in_specs=[
                pl.BlockSpec((tm, Kp), lambda i, j: (i, 0)),
                pl.BlockSpec((Kp, tn), lambda i, j: (0, j)),
                pl.BlockSpec((1, tn), lambda i, j: (0, j)),
            ],
            out_specs=pl.BlockSpec((tm, tn), lambda i, j: (i, j)),
            out_shape=jax.ShapeDtypeStruct((Mp, Np), jnp.float32),
            compiler_params=pltpu.CompilerParams(
                dimension_semantics=("parallel", "parallel")),
        )(xp, wp, bp)
    else:
        out = pl.pallas_call(
            functools.partial(_mm_bias_kernel, activation=activation, nk=nk),
            grid=(Mp // tm, Np // tn, nk),
            in_specs=[
                pl.BlockSpec((tm, tk), lambda i, j, k: (i, k)),
                pl.BlockSpec((tk, tn), lambda i, j, k: (k, j)),
                pl.BlockSpec((1, tn), lambda i, j, k: (0, j)),
            ],
            out_specs=pl.BlockSpec((tm, tn), lambda i, j, k: (i, j)),
            out_shape=jax.ShapeDtypeStruct((Mp, Np), jnp.float32),
            scratch_shapes=[pltpu.VMEM((tm, tn), jnp.float32)],
            compiler_params=pltpu.CompilerParams(
                dimension_semantics=("parallel", "parallel", "arbitrary")),
        )(xp, wp, bp)
    return out[:M, :N]


# ----------------------------------- model glue -----------------------------------
def demonstration_encoder(params, obs, dirs, acts, obs_lens):
    B, T = obs.shape[0], obs.shape[1]
    Bp, _, bb = _batch_blocks(B)
    chunk = _pick_time_chunk(T, bb)
    Tp = _round_up(T, chunk)

    # time-major padded inputs: only obs needs a real transpose; index arrays are tiny
    obs_tm = jnp.pad(jnp.transpose(obs.reshape(B, T, 147), (1, 0, 2)),
                     ((0, Tp - T), (0, Bp - B), (0, 0)))
    dirs_tm = jnp.pad(dirs.T, ((0, Tp - T), (0, Bp - B)))
    acts_tm = jnp.pad(acts.T, ((0, Tp - T), (0, Bp - B)))

    inp = encoder_inputs(params, obs_tm, dirs_tm, acts_tm)        # (Tp,Bp,256) bf16

    w_ih = jnp.pad(params["enc_w_ih"],
                   ((0, ENC_IN - params["enc_w_ih"].shape[0]), (0, 0)))
    lens = jnp.zeros((Bp, 1), jnp.int32).at[:B, 0].set(
        jnp.asarray(np.asarray(obs_lens), jnp.int32))
    h0 = jnp.zeros((Bp, HIDDEN), jnp.float32)
    # encoder GRU: h_last only, no h_all writeback
    _, h_last = gru_forward(inp, w_ih, params["enc_b_ih"],
                            params["enc_w_hh"], params["enc_b_hh"], h0, lens,
                            chunk=chunk, batch_block=bb, collect_all=False)
    return h_last[:B]                                             # (B, 512) f32


def language_decoder(params, enc_out, langs, lang_lens):
    B = langs.shape[0]
    tgt_len = np.asarray(lang_lens) - 1                           # host lengths
    t_dec = int(tgt_len.max())
    Bp, _, bb = _batch_blocks(B)
    chunk = _pick_time_chunk(t_dec, bb)
    Tp = _round_up(t_dec, chunk)

    tgt_tm = jnp.pad(langs[:, :t_dec].T, ((0, Tp - t_dec), (0, Bp - B)))
    emb = jnp.take(params["word_emb"].astype(jnp.bfloat16), tgt_tm, axis=0)  # (Tp,Bp,300)

    lens = jnp.zeros((Bp, 1), jnp.int32).at[:B, 0].set(jnp.asarray(tgt_len, jnp.int32))
    h0 = jnp.pad(enc_out, ((0, Bp - B), (0, 0)))
    h_all, _ = gru_forward(emb, params["dec_w_ih"], params["dec_b_ih"],
                           params["dec_w_hh"], params["dec_b_hh"], h0, lens,
                           chunk=chunk, batch_block=bb, collect_all=True)   # bf16

    # Reproduce pack_padded_sequence(enforce_sorted=False) packed-data row ordering.
    # TODO(synk): torch.sort tie-break is not documented as stable; stable sort used here.
    sorted_idx = np.argsort(-tgt_len, kind="stable")
    t_idx, b_idx = [], []
    for t in range(t_dec):
        for b in sorted_idx:
            if tgt_len[b] > t:
                t_idx.append(t)
                b_idx.append(int(b))
    packed_h = h_all[jnp.asarray(t_idx), jnp.asarray(b_idx)]       # (Npacked, 512) bf16
    logits = matmul_bias(packed_h, params["dense_w"], params["dense_b"])
    return logits                                                  # (Npacked, V) f32


def teacher_forward(params, obs, dirs, acts, obs_lens, langs, lang_lens):
    demos_enc = demonstration_encoder(params, obs, dirs, acts, obs_lens)
    return language_decoder(params, demos_enc, langs, lang_lens)


# --------------------------------- parameter init ---------------------------------
def init_params(key, n_dirs, n_acts, vocab_size):
    def u(k, shape, s=0.1):
        return jax.random.uniform(k, shape, jnp.float32, -s, s)

    ks = iter(jax.random.split(key, 32))
    H, G = HIDDEN, 3 * HIDDEN
    p = {}
    p["conv1_w"] = u(next(ks), (16, 3, 2, 2))
    p["conv1_b"] = u(next(ks), (16,))
    p["conv2_w"] = u(next(ks), (32, 16, 2, 2))
    p["conv2_b"] = u(next(ks), (32,))
    p["conv3_w"] = u(next(ks), (64, 32, 2, 2))
    p["conv3_b"] = u(next(ks), (64,))
    p["dir_emb"] = u(next(ks), (n_dirs, 50)).at[0].set(0.0)        # padding_idx=0
    p["act_emb"] = u(next(ks), (n_acts, 100)).at[0].set(0.0)       # padding_idx=0
    enc_in = 64 + 50 + 100
    p["enc_w_ih"] = u(next(ks), (enc_in, G))      # transposed PyTorch weight_ih (r|z|n)
    p["enc_w_hh"] = u(next(ks), (H, G))           # transposed PyTorch weight_hh
    p["enc_b_ih"] = u(next(ks), (G,))
    p["enc_b_hh"] = u(next(ks), (G,))
    p["word_emb"] = u(next(ks), (vocab_size, 300)).at[0].set(0.0)
    p["dec_w_ih"] = u(next(ks), (300, G))
    p["dec_w_hh"] = u(next(ks), (H, G))
    p["dec_b_ih"] = u(next(ks), (G,))
    p["dec_b_hh"] = u(next(ks), (G,))
    p["dense_w"] = u(next(ks), (H, vocab_size))
    p["dense_b"] = u(next(ks), (vocab_size,))
    return p


# -------------------------------------- main --------------------------------------
if __name__ == "__main__":
    vocab = {"<PAD>": 0, "<SOS>": 1, "<EOS>": 2, "go": 3, "to": 4, "the": 5,
             "red": 6, "blue": 7, "door": 8, "key": 9, "ball": 10, "box": 11}
    n_dirs, n_acts = 5, 8
    B, T, L = 2, 8, 7

    key = jax.random.PRNGKey(0)
    k_obs, k_dir, k_act, k_lang, k_par = jax.random.split(key, 5)

    obs = jax.random.normal(k_obs, (B, T, 3, 7, 7), jnp.float32)
    dirs = jax.random.randint(k_dir, (B, T), 0, n_dirs).astype(jnp.int32)
    acts = jax.random.randint(k_act, (B, T), 0, n_acts).astype(jnp.int32)
    obs_lens = np.array([8, 5])                     # host lengths (pack semantics)
    langs = jax.random.randint(k_lang, (B, L), 0, len(vocab)).astype(jnp.int32)
    lang_lens = np.array([7, 5])

    params = init_params(k_par, n_dirs, n_acts, len(vocab))

    logits = teacher_forward(params, obs, dirs, acts, obs_lens, langs, lang_lens)
    logits = jax.block_until_ready(logits)
    assert logits.shape == (int(np.sum(lang_lens - 1)), len(vocab))
    assert logits.dtype == jnp.float32
    print("KERNEL_OK")
</pallas_src>

<mosaic_0001>
module attributes {stable_mosaic.version = 11 : i64} {
  func.func @_enc_input_kernel(%arg0: i32, %arg1: memref<8x8x147xf32, #tpu.memory_space<vmem>>, %arg2: memref<8x8x50xbf16, #tpu.memory_space<vmem>>, %arg3: memref<8x8x100xbf16, #tpu.memory_space<vmem>>, %arg4: memref<147x576xbf16, #tpu.memory_space<vmem>>, %arg5: memref<1x576xf32, #tpu.memory_space<vmem>>, %arg6: memref<144x128xbf16, #tpu.memory_space<vmem>>, %arg7: memref<1x128xf32, #tpu.memory_space<vmem>>, %arg8: memref<128x64xbf16, #tpu.memory_space<vmem>>, %arg9: memref<1x64xf32, #tpu.memory_space<vmem>>, %arg10: memref<8x8x256xbf16, #tpu.memory_space<vmem>>) attributes {dimension_semantics = [#tpu.dimension_semantics<parallel>], iteration_bounds = array<i64: 1>, scalar_prefetch = 0 : i64, scratch_operands = 0 : i64, tpu.core_type = #tpu.core_type<tc>, window_params = [{transform_indices = @transform_0, window_bounds = array<i64: 8, 8, 147>}, {transform_indices = @transform_1, window_bounds = array<i64: 8, 8, 50>}, {transform_indices = @transform_2, window_bounds = array<i64: 8, 8, 100>}, {pipeline_mode = #tpu.pipeline_mode<synchronous>, transform_indices = @transform_3, window_bounds = array<i64: 147, 576>}, {pipeline_mode = #tpu.pipeline_mode<synchronous>, transform_indices = @transform_4, window_bounds = array<i64: 1, 576>}, {pipeline_mode = #tpu.pipeline_mode<synchronous>, transform_indices = @transform_5, window_bounds = array<i64: 144, 128>}, {pipeline_mode = #tpu.pipeline_mode<synchronous>, transform_indices = @transform_6, window_bounds = array<i64: 1, 128>}, {pipeline_mode = #tpu.pipeline_mode<synchronous>, transform_indices = @transform_7, window_bounds = array<i64: 128, 64>}, {pipeline_mode = #tpu.pipeline_mode<synchronous>, transform_indices = @transform_8, window_bounds = array<i64: 1, 64>}, {transform_indices = @transform_9, window_bounds = array<i64: 8, 8, 256>}]} {
    %c0 = arith.constant 0 : index
    %c0_0 = arith.constant 0 : index
    %c0_1 = arith.constant 0 : index
    %0 = vector.load %arg1[%c0, %c0_0, %c0_1] : memref<8x8x147xf32, #tpu.memory_space<vmem>>, vector<8x8x147xf32>
    %1 = vector.shape_cast %0 : vector<8x8x147xf32> to vector<64x147xf32>
    %2 = arith.truncf %1 : vector<64x147xf32> to vector<64x147xbf16>
    %c0_2 = arith.constant 0 : index
    %c0_3 = arith.constant 0 : index
    %3 = vector.load %arg4[%c0_2, %c0_3] : memref<147x576xbf16, #tpu.memory_space<vmem>>, vector<147x576xbf16>
    %cst = arith.constant dense<0.000000e+00> : vector<64x576xf32>
    %4 = tpu.matmul %2, %3, %cst {dimension_numbers = #tpu.dot_dimension_numbers<[1], [0], [0], [1], [0, 0, 1, 1], [], []>} : vector<64x147xbf16>, vector<147x576xbf16>, vector<64x576xf32> -> vector<64x576xf32>
    %c0_4 = arith.constant 0 : index
    %c0_5 = arith.constant 0 : index
    %5 = vector.load %arg5[%c0_4, %c0_5] : memref<1x576xf32, #tpu.memory_space<vmem>>, vector<1x576xf32>
    %6 = vector.broadcast %5 : vector<1x576xf32> to vector<64x576xf32>
    %7 = arith.addf %4, %6 : vector<64x576xf32>
    %cst_6 = arith.constant 0.000000e+00 : f32
    %8 = vector.broadcast %cst_6 : f32 to vector<64x576xf32>
    %9 = arith.maximumf %7, %8 : vector<64x576xf32>
    %10 = vector.extract_strided_slice %9 {offsets = [0, 0], sizes = [64, 144], strides = [1, 1]} : vector<64x576xf32> to vector<64x144xf32>
    %11 = vector.extract_strided_slice %9 {offsets = [0, 144], sizes = [64, 144], strides = [1, 1]} : vector<64x576xf32> to vector<64x144xf32>
    %12 = arith.maximumf %10, %11 : vector<64x144xf32>
    %13 = vector.extract_strided_slice %9 {offsets = [0, 288], sizes = [64, 144], strides = [1, 1]} : vector<64x576xf32> to vector<64x144xf32>
    %14 = vector.extract_strided_slice %9 {offsets = [0, 432], sizes = [64, 144], strides = [1, 1]} : vector<64x576xf32> to vector<64x144xf32>
    %15 = arith.maximumf %13, %14 : vector<64x144xf32>
    %16 = arith.maximumf %12, %15 : vector<64x144xf32>
    %17 = arith.truncf %16 : vector<64x144xf32> to vector<64x144xbf16>
    %c0_7 = arith.constant 0 : index
    %c0_8 = arith.constant 0 : index
    %18 = vector.load %arg6[%c0_7, %c0_8] : memref<144x128xbf16, #tpu.memory_space<vmem>>, vector<144x128xbf16>
    %cst_9 = arith.constant dense<0.000000e+00> : vector<64x128xf32>
    %19 = tpu.matmul %17, %18, %cst_9 {dimension_numbers = #tpu.dot_dimension_numbers<[1], [0], [0], [1], [0, 0, 1, 1], [], []>} : vector<64x144xbf16>, vector<144x128xbf16>, vector<64x128xf32> -> vector<64x128xf32>
    %c0_10 = arith.constant 0 : index
    %c0_11 = arith.constant 0 : index
    %20 = vector.load %arg7[%c0_10, %c0_11] : memref<1x128xf32, #tpu.memory_space<vmem>>, vector<1x128xf32>
    %21 = vector.broadcast %20 : vector<1x128xf32> to vector<64x128xf32>
    %22 = arith.addf %19, %21 : vector<64x128xf32>
    %cst_12 = arith.constant 0.000000e+00 : f32
    %23 = vector.broadcast %cst_12 : f32 to vector<64x128xf32>
    %24 = arith.maximumf %22, %23 : vector<64x128xf32>
    %25 = arith.truncf %24 : vector<64x128xf32> to vector<64x128xbf16>
    %c0_13 = arith.constant 0 : index
    %c0_14 = arith.constant 0 : index
    %26 = vector.load %arg8[%c0_13, %c0_14] : memref<128x64xbf16, #tpu.memory_space<vmem>>, vector<128x64xbf16>
    %cst_15 = arith.constant dense<0.000000e+00> : vector<64x64xf32>
    %27 = tpu.matmul %25, %26, %cst_15 {dimension_numbers = #tpu.dot_dimension_numbers<[1], [0], [0], [1], [0, 0, 1, 1], [], []>} : vector<64x128xbf16>, vector<128x64xbf16>, vector<64x64xf32> -> vector<64x64xf32>
    %c0_16 = arith.constant 0 : index
    %c0_17 = arith.constant 0 : index
    %28 = vector.load %arg9[%c0_16, %c0_17] : memref<1x64xf32, #tpu.memory_space<vmem>>, vector<1x64xf32>
    %29 = vector.broadcast %28 : vector<1x64xf32> to vector<64x64xf32>
    %30 = arith.addf %27, %29 : vector<64x64xf32>
    %cst_18 = arith.constant 0.000000e+00 : f32
    %31 = vector.broadcast %cst_18 : f32 to vector<64x64xf32>
    %32 = arith.maximumf %30, %31 : vector<64x64xf32>
    %33 = arith.truncf %32 : vector<64x64xf32> to vector<64x64xbf16>
    %c0_19 = arith.constant 0 : index
    %c0_20 = arith.constant 0 : index
    %c0_21 = arith.constant 0 : index
    %34 = vector.load %arg2[%c0_19, %c0_20, %c0_21] : memref<8x8x50xbf16, #tpu.memory_space<vmem>>, vector<8x8x50xbf16>
    %35 = vector.shape_cast %34 : vector<8x8x50xbf16> to vector<64x50xbf16>
    %c0_22 = arith.constant 0 : index
    %c0_23 = arith.constant 0 : index
    %c0_24 = arith.constant 0 : index
    %36 = vector.load %arg3[%c0_22, %c0_23, %c0_24] : memref<8x8x100xbf16, #tpu.memory_space<vmem>>, vector<8x8x100xbf16>
    %37 = vector.shape_cast %36 : vector<8x8x100xbf16> to vector<64x100xbf16>
    %cst_25 = arith.constant 0.000000e+00 : bf16
    %38 = vector.broadcast %cst_25 : bf16 to vector<64x42xbf16>
    %39 = tpu.concatenate %33, %35, %37, %38 in 1 : vector<64x64xbf16>, vector<64x50xbf16>, vector<64x100xbf16>, vector<64x42xbf16> -> vector<64x256xbf16>
    %40 = vector.shape_cast %39 : vector<64x256xbf16> to vector<8x8x256xbf16>
    %c0_26 = arith.constant 0 : index
    %c0_27 = arith.constant 0 : index
    %c0_28 = arith.constant 0 : index
    %41 = vector.load %arg10[%c0_26, %c0_27, %c0_28] : memref<8x8x256xbf16, #tpu.memory_space<vmem>>, vector<8x8x256xbf16>
    tpu.vector_store %arg10[%c0_26, %c0_27, %c0_28], %40 {strides = array<i32>} : memref<8x8x256xbf16, #tpu.memory_space<vmem>>, vector<8x8x256xbf16>,
    return
  }
  func.func @transform_0(%arg0: i32) -> (i32, i32, i32) {
    %c0_i32 = arith.constant 0 : i32
    %c0_i32_0 = arith.constant 0 : i32
    %c0_i32_1 = arith.constant 0 : i32
    return %arg0, %c0_i32, %c0_i32_0 : i32, i32, i32
  }
  func.func @transform_1(%arg0: i32) -> (i32, i32, i32) {
    %c0_i32 = arith.constant 0 : i32
    %c0_i32_0 = arith.constant 0 : i32
    %c0_i32_1 = arith.constant 0 : i32
    return %arg0, %c0_i32, %c0_i32_0 : i32, i32, i32
  }
  func.func @transform_2(%arg0: i32) -> (i32, i32, i32) {
    %c0_i32 = arith.constant 0 : i32
    %c0_i32_0 = arith.constant 0 : i32
    %c0_i32_1 = arith.constant 0 : i32
    return %arg0, %c0_i32, %c0_i32_0 : i32, i32, i32
  }
  func.func @transform_3(%arg0: i32) -> (i32, i32) {
    %c0_i32 = arith.constant 0 : i32
    %c0_i32_0 = arith.constant 0 : i32
    %c0_i32_1 = arith.constant 0 : i32
    return %c0_i32, %c0_i32_0 : i32, i32
  }
  func.func @transform_4(%arg0: i32) -> (i32, i32) {
    %c0_i32 = arith.constant 0 : i32
    %c0_i32_0 = arith.constant 0 : i32
    %c0_i32_1 = arith.constant 0 : i32
    return %c0_i32, %c0_i32_0 : i32, i32
  }
  func.func @transform_5(%arg0: i32) -> (i32, i32) {
    %c0_i32 = arith.constant 0 : i32
    %c0_i32_0 = arith.constant 0 : i32
    %c0_i32_1 = arith.constant 0 : i32
    return %c0_i32, %c0_i32_0 : i32, i32
  }
  func.func @transform_6(%arg0: i32) -> (i32, i32) {
    %c0_i32 = arith.constant 0 : i32
    %c0_i32_0 = arith.constant 0 : i32
    %c0_i32_1 = arith.constant 0 : i32
    return %c0_i32, %c0_i32_0 : i32, i32
  }
  func.func @transform_7(%arg0: i32) -> (i32, i32) {
    %c0_i32 = arith.constant 0 : i32
    %c0_i32_0 = arith.constant 0 : i32
    %c0_i32_1 = arith.constant 0 : i32
    return %c0_i32, %c0_i32_0 : i32, i32
  }
  func.func @transform_8(%arg0: i32) -> (i32, i32) {
    %c0_i32 = arith.constant 0 : i32
    %c0_i32_0 = arith.constant 0 : i32
    %c0_i32_1 = arith.constant 0 : i32
    return %c0_i32, %c0_i32_0 : i32, i32
  }
  func.func @transform_9(%arg0: i32) -> (i32, i32, i32) {
    %c0_i32 = arith.constant 0 : i32
    %c0_i32_0 = arith.constant 0 : i32
    %c0_i32_1 = arith.constant 0 : i32
    return %arg0, %c0_i32, %c0_i32_0 : i32, i32, i32
  }
}

</mosaic_0001>

<llo_original>
// kernel: tpu_custom_call.1
$region0: #{tpu_custom_call.1}
  #allocation0 [shape = 'u32[]', space=smem, size = 0x4, offset = 0x4, fixed_abs, tag = 'smem constant byte address 0x4 - core index']
  #allocation1 [shape = 'u32[144,128]{1,0:T(1,128)}', space=vmem, size = 0x12000, scoped, tag = 'internal scratch']
  %s0 = inlined_call_operand.hbm [shape: f32[8,8,147], index: 0, kind: input, shape index: {}]
  %s1 = inlined_call_operand.vmem [shape: bf16[8,8,50], index: 1, kind: input, shape index: {}]
  %s2 = inlined_call_operand.hbm [shape: bf16[8,8,100], index: 2, kind: input, shape index: {}]
  %s3 = inlined_call_operand.hbm [shape: bf16[147,576], index: 3, kind: input, shape index: {}]
  %s4 = inlined_call_operand.vmem [shape: f32[1,576], index: 4, kind: input, shape index: {}]
  %s5 = inlined_call_operand.vmem [shape: bf16[144,128], index: 5, kind: input, shape index: {}]
  %s6 = inlined_call_operand.vmem [shape: f32[1,128], index: 6, kind: input, shape index: {}]
  %s7 = inlined_call_operand.vmem [shape: bf16[128,64], index: 7, kind: input, shape index: {}]
  %s8 = inlined_call_operand.vmem [shape: f32[1,64], index: 8, kind: input, shape index: {}]
  %s9 = inlined_call_operand.hbm [shape: bf16[8,8,256], index: 9, kind: output, shape index: {}]
  %s10 = sld [smem:[#allocation0]]
  $region58: #{tpu_custom_call.1} parent=0
    _
  %s12 = ssub.s32 1, %s10
  %s13 = scalar_select 0, %s12, %s10
  $region1: #{tpu_custom_call.1} parent=0
    #allocation2 [shape = 'u8[65536]{0}', space=vmem, size = 0x10000, scoped, tag = 'input window, operand 0, single buffered']
    #allocation3 [shape = 's32[1]{0}', space=sflag, size = 0x4, scoped, tag = 'scoped memory for tpu_custom_call.1']
    #allocation4 [shape = 's32[1]{0}', space=sflag, size = 0x4, scoped, tag = 'scoped memory for tpu_custom_call.1']
    #allocation5 [shape = 'u8[16384]{0}', space=vmem, size = 0x4000, scoped, tag = 'input window, operand 2, single buffered']
    #allocation6 [shape = 's32[1]{0}', space=sflag, size = 0x4, scoped, tag = 'scoped memory for tpu_custom_call.1']
    #allocation7 [shape = 'u8[194560]{0}', space=vmem, size = 0x2f800, scoped, tag = 'input window, operand 3, single buffered']
    #allocation8 [shape = 'u8[32768]{0}', space=vmem, size = 0x8000, scoped, tag = 'output window, operand 0, single buffered']
    %14 = vsyncpa [#allocation3], 0
    %15 = vsyncpa [#allocation6], 0
    %16 = vsyncpa [#allocation4], 0
    // Predicated region
    $region2: #{tpu_custom_call.1} parent=1 // pred_check
      _
    $region3: #{tpu_custom_call.1} parent=1 // pred_check_branch
      %18 = sbr.rel (0) target = $region5
    $region4: #{tpu_custom_call.1} parent=1 // pred_region
      %s20 = ssub.s32 2048, 2048
      %21 = vsyncadd [#allocation3], %s20
      %s22 = sshll.u32 [#allocation2], 4
      %s23 = int_to_ptr.vmem [resolvable:$true] %s22
      %28 = dma.hbm_to_vmem [thread:$0]  %s0, 2048, %s23, [#allocation3], 256, 256, 16
    $region5: #{tpu_custom_call.1} parent=1 // pred_fallthru
      _
    // Predicated region
    $region6: #{tpu_custom_call.1} parent=1 // pred_check
      _
    $region7: #{tpu_custom_call.1} parent=1 // pred_check_branch
      %30 = sbr.rel (0) target = $region9
    $region8: #{tpu_custom_call.1} parent=1 // pred_region
      _
    $region9: #{tpu_custom_call.1} parent=1 // pred_fallthru
      _
    // Predicated region
    $region10: #{tpu_custom_call.1} parent=1 // pred_check
      _
    $region11: #{tpu_custom_call.1} parent=1 // pred_check_branch
      %32 = sbr.rel (0) target = $region13
    $region12: #{tpu_custom_call.1} parent=1 // pred_region
      %s34 = ssub.s32 512, 512
      %35 = vsyncadd [#allocation6], %s34
      %s36 = sshll.u32 [#allocation5], 4
      %s37 = int_to_ptr.vmem [resolvable:$true] %s36
      %42 = dma.hbm_to_vmem [thread:$0]  %s2, 512, %s37, [#allocation6], 64, 64, 4
    $region13: #{tpu_custom_call.1} parent=1 // pred_fallthru
      _
    // Predicated region
    $region14: #{tpu_custom_call.1} parent=1 // pred_check
      _
    $region15: #{tpu_custom_call.1} parent=1 // pred_check_branch
      %44 = sbr.rel (0) target = $region17
    $region16: #{tpu_custom_call.1} parent=1 // pred_region
      %s46 = ssub.s32 6080, 6080
      %47 = vsyncadd [#allocation6], %s46
      %s48 = sshll.u32 [#allocation7], 4
      %s49 = int_to_ptr.vmem [resolvable:$true] %s48
      %54 = dma.hbm_to_vmem [thread:$0]  %s3, 6080, %s49, [#allocation6], 320, 320, 20
    $region17: #{tpu_custom_call.1} parent=1 // pred_fallthru
      _
    // Predicated region
    $region18: #{tpu_custom_call.1} parent=1 // pred_check
      _
    $region19: #{tpu_custom_call.1} parent=1 // pred_check_branch
      %56 = sbr.rel (0) target = $region21
    $region20: #{tpu_custom_call.1} parent=1 // pred_region
      _
    $region21: #{tpu_custom_call.1} parent=1 // pred_fallthru
      _
    // Predicated region
    $region22: #{tpu_custom_call.1} parent=1 // pred_check
      _
    $region23: #{tpu_custom_call.1} parent=1 // pred_check_branch
      %58 = sbr.rel (0) target = $region25
    $region24: #{tpu_custom_call.1} parent=1 // pred_region
      _
    $region25: #{tpu_custom_call.1} parent=1 // pred_fallthru
      _
    // Predicated region
    $region26: #{tpu_custom_call.1} parent=1 // pred_check
      _
    $region27: #{tpu_custom_call.1} parent=1 // pred_check_branch
      %60 = sbr.rel (0) target = $region29
    $region28: #{tpu_custom_call.1} parent=1 // pred_region
      _
    $region29: #{tpu_custom_call.1} parent=1 // pred_fallthru
      _
    // Predicated region
    $region30: #{tpu_custom_call.1} parent=1 // pred_check
      _
    $region31: #{tpu_custom_call.1} parent=1 // pred_check_branch
      %62 = sbr.rel (0) target = $region33
    $region32: #{tpu_custom_call.1} parent=1 // pred_region
      _
    $region33: #{tpu_custom_call.1} parent=1 // pred_fallthru
      _
    // Predicated region
    $region34: #{tpu_custom_call.1} parent=1 // pred_check
      _
    $region35: #{tpu_custom_call.1} parent=1 // pred_check_branch
      %64 = sbr.rel (0) target = $region37
    $region36: #{tpu_custom_call.1} parent=1 // pred_region
      _
    $region37: #{tpu_custom_call.1} parent=1 // pred_fallthru
      _
    // Predicated region
    $region38: #{tpu_custom_call.1} parent=1 // pred_check
      _
    $region39: #{tpu_custom_call.1} parent=1 // pred_check_branch
      %66 = sbr.rel (0) target = $region41
    $region40: #{tpu_custom_call.1} parent=1 // pred_region
      %67 = dma.done [#allocation3], 2048
    $region41: #{tpu_custom_call.1} parent=1 // pred_fallthru
      _
    // Predicated region
    $region42: #{tpu_custom_call.1} parent=1 // pred_check
      _
    $region43: #{tpu_custom_call.1} parent=1 // pred_check_branch
      %69 = sbr.rel (0) target = $region45
    $region44: #{tpu_custom_call.1} parent=1 // pred_region
      %70 = dma.done [#allocation6], 512
    $region45: #{tpu_custom_call.1} parent=1 // pred_fallthru
      _
    // Predicated region
    $region46: #{tpu_custom_call.1} parent=1 // pred_check
      _
    $region47: #{tpu_custom_call.1} parent=1 // pred_check_branch
      %72 = sbr.rel (0) target = $region49
    $region48: #{tpu_custom_call.1} parent=1 // pred_region
      %73 = dma.done [#allocation6], 6080
    $region49: #{tpu_custom_call.1} parent=1 // pred_fallthru
      _
    %v75 = vld [vmem:[#allocation2] sm:$0xff]
    %v76 = vld [vmem:[#allocation2 + $0x8] sm:$0xff]
    %v77 = vld [vmem:[#allocation2 + $0x10] sm:$0xff]
    %v78 = vld [vmem:[#allocation2 + $0x18] sm:$0xff]
    %v79 = vld [vmem:[#allocation2 + $0x20] sm:$0xff]
    %v80 = vld [vmem:[#allocation2 + $0x28] sm:$0xff]
    %v81 = vld [vmem:[#allocation2 + $0x30] sm:$0xff]
    %v82 = vld [vmem:[#allocation2 + $0x38] sm:$0xff]
    %v83 = vld [vmem:[#allocation2 + $0x40] sm:$0xff]
    %v84 = vld [vmem:[#allocation2 + $0x48] sm:$0xff]
    %v85 = vld [vmem:[#allocation2 + $0x50] sm:$0xff]
    %v86 = vld [vmem:[#allocation2 + $0x58] sm:$0xff]
    %v87 = vld [vmem:[#allocation2 + $0x60] sm:$0xff]
    %v88 = vld [vmem:[#allocation2 + $0x68] sm:$0xff]
    %v89 = vld [vmem:[#allocation2 + $0x70] sm:$0xff]
    %v90 = vld [vmem:[#allocation2 + $0x78] sm:$0xff]
    %v91 = vpack.c.bf16 %v77, %v75
    %v92 = vpack.c.bf16 %v78, %v76
    %v93 = vpack.c.bf16 %v81, %v79
    %v94 = vpack.c.bf16 %v82, %v80
    %v95 = vpack.c.bf16 %v85, %v83
    %v96 = vpack.c.bf16 %v86, %v84
    %v97 = vpack.c.bf16 %v89, %v87
    %v98 = vpack.c.bf16 %v90, %v88
    %v99 = vld [vmem:[#allocation7] sm:$0xff]
    %v100 = vld [vmem:[#allocation7 + $0x8] sm:$0xff]
    %v101 = vld [vmem:[#allocation7 + $0x10] sm:$0xf]
    %v102 = vld [vmem:[#allocation7 + $0x14] sm:$0xff]
    %v103 = vld [vmem:[#allocation7 + $0x1c] sm:$0xff]
    %v104 = vld [vmem:[#allocation7 + $0x24] sm:$0xf]
    %v105 = vld [vmem:[#allocation7 + $0x28] sm:$0xff]
    %v106 = vld [vmem:[#allocation7 + $0x30] sm:$0xff]
    %v107 = vld [vmem:[#allocation7 + $0x38] sm:$0xf]
    %v108 = vld [vmem:[#allocation7 + $0x3c] sm:$0xff]
    %v109 = vld [vmem:[#allocation7 + $0x44] sm:$0xff]
    %v110 = vld [vmem:[#allocation7 + $0x4c] sm:$0xf]
    %v111 = vld [vmem:[#allocation7 + $0x50] sm:$0xff]
    %v112 = vld [vmem:[#allocation7 + $0x58] sm:$0xff]
    %v113 = vld [vmem:[#allocation7 + $0x60] sm:$0xf]
    %v114 = vld [vmem:[#allocation7 + $0x64] sm:$0xff]
    %v115 = vld [vmem:[#allocation7 + $0x6c] sm:$0xff]
    %v116 = vld [vmem:[#allocation7 + $0x74] sm:$0xf]
    %v117 = vld [vmem:[#allocation7 + $0x78] sm:$0xff]
    %v118 = vld [vmem:[#allocation7 + $0x80] sm:$0xff]
    %v119 = vld [vmem:[#allocation7 + $0x88] sm:$0xf]
    %v120 = vld [vmem:[#allocation7 + $0x8c] sm:$0xff]
    %v121 = vld [vmem:[#allocation7 + $0x94] sm:$0xff]
    %v122 = vld [vmem:[#allocation7 + $0x9c] sm:$0xf]
    %v123 = vld [vmem:[#allocation7 + $0xa0] sm:$0xff]
    %v124 = vld [vmem:[#allocation7 + $0xa8] sm:$0xff]
    %v125 = vld [vmem:[#allocation7 + $0xb0] sm:$0xf]
    %v126 = vld [vmem:[#allocation7 + $0xb4] sm:$0xff]
    %v127 = vld [vmem:[#allocation7 + $0xbc] sm:$0xff]
    %v128 = vld [vmem:[#allocation7 + $0xc4] sm:$0xf]
    %v129 = vld [vmem:[#allocation7 + $0xc8] sm:$0xff]
    %v130 = vld [vmem:[#allocation7 + $0xd0] sm:$0xff]
    %v131 = vld [vmem:[#allocation7 + $0xd8] sm:$0xf]
    %v132 = vld [vmem:[#allocation7 + $0xdc] sm:$0xff]
    %v133 = vld [vmem:[#allocation7 + $0xe4] sm:$0xff]
    %v134 = vld [vmem:[#allocation7 + $0xec] sm:$0xf]
    %v135 = vld [vmem:[#allocation7 + $0xf0] sm:$0xff]
    %v136 = vld [vmem:[#allocation7 + $0xf8] sm:$0xff]
    %v137 = vld [vmem:[#allocation7 + $0x100] sm:$0xf]
    %v138 = vld [vmem:[#allocation7 + $0x104] sm:$0xff]
    %v139 = vld [vmem:[#allocation7 + $0x10c] sm:$0xff]
    %v140 = vld [vmem:[#allocation7 + $0x114] sm:$0xf]
    %v141 = vld [vmem:[#allocation7 + $0x118] sm:$0xff]
    %v142 = vld [vmem:[#allocation7 + $0x120] sm:$0xff]
    %v143 = vld [vmem:[#allocation7 + $0x128] sm:$0xf]
    %v144 = vld [vmem:[#allocation7 + $0x12c] sm:$0xff]
    %v145 = vld [vmem:[#allocation7 + $0x134] sm:$0xff]
    %v146 = vld [vmem:[#allocation7 + $0x13c] sm:$0xf]
    %v147 = vld [vmem:[#allocation7 + $0x140] sm:$0xff]
    %v148 = vld [vmem:[#allocation7 + $0x148] sm:$0xff]
    %v149 = vld [vmem:[#allocation7 + $0x150] sm:$0xf]
    %v150 = vld [vmem:[#allocation7 + $0x154] sm:$0xff]
    %v151 = vld [vmem:[#allocation7 + $0x15c] sm:$0xff]
    %v152 = vld [vmem:[#allocation7 + $0x164] sm:$0xf]
    %v153 = vld [vmem:[#allocation7 + $0x168] sm:$0x33]
    %v154 = vld [vmem:[#allocation7 + $0x170] sm:$0x33]
    %v155 = vld [vmem:[#allocation7 + $0x178] sm:$0x3]
    %v156 = vld [vmem:[%s4] sm:$0x1f]
    %v158 = vlaneseq
    %v159 = vshrl.u32 %v158, 7
    %v160 = vsub.s32 0, %v159
    %v161 = vrot.slane %v156, %v160
    %v162 = vlaneseq
    %v163 = vshrl.u32 %v162, 7
    %v164 = vsub.s32 1, %v163
    %v165 = vrot.slane %v156, %v164
    %v166 = vlaneseq
    %v167 = vshrl.u32 %v166, 7
    %v168 = vsub.s32 2, %v167
    %v169 = vrot.slane %v156, %v168
    %v170 = vlaneseq
    %v171 = vshrl.u32 %v170, 7
    %v172 = vsub.s32 3, %v171
    %v173 = vrot.slane %v156, %v172
    %v174 = vlaneseq
    %v175 = vshrl.u32 %v174, 7
    %v176 = vsub.s32 4, %v175
    %v177 = vrot.slane %v156, %v176
    %v240 = vunpack.c.l.b16 %v99
    %v241 = vunpack.c.h.b16 %v99
    %v242 = vunpack.c.l.b16 %v100
    %v243 = vunpack.c.h.b16 %v100
    %v244 = vunpack.c.l.b16 %v101
    %v245 = vunpack.c.l.b16 %v102
    %v246 = vunpack.c.h.b16 %v102
    %v247 = vunpack.c.l.b16 %v103
    %v248 = vunpack.c.h.b16 %v103
    %v249 = vunpack.c.l.b16 %v104
    %v250 = vunpack.c.l.b16 %v105
    %v251 = vunpack.c.h.b16 %v105
    %v252 = vunpack.c.l.b16 %v106
    %v253 = vunpack.c.h.b16 %v106
    %v254 = vunpack.c.l.b16 %v107
    %v255 = vunpack.c.l.b16 %v108
    %v256 = vunpack.c.h.b16 %v108
    %v257 = vunpack.c.l.b16 %v109
    %v258 = vunpack.c.h.b16 %v109
    %v259 = vunpack.c.l.b16 %v110
    %v260 = vunpack.c.l.b16 %v111
    %v261 = vunpack.c.h.b16 %v111
    %v262 = vunpack.c.l.b16 %v112
    %v263 = vunpack.c.h.b16 %v112
    %v264 = vunpack.c.l.b16 %v113
    %v265 = vunpack.c.l.b16 %v114
    %v266 = vunpack.c.h.b16 %v114
    %v267 = vunpack.c.l.b16 %v115
    %v268 = vunpack.c.h.b16 %v115
    %v269 = vunpack.c.l.b16 %v116
    %v270 = vunpack.c.l.b16 %v117
    %v271 = vunpack.c.h.b16 %v117
    %v272 = vunpack.c.l.b16 %v118
    %v273 = vunpack.c.h.b16 %v118
    %v274 = vunpack.c.l.b16 %v119
    %v275 = vunpack.c.l.b16 %v120
    %v276 = vunpack.c.h.b16 %v120
    %v277 = vunpack.c.l.b16 %v121
    %v278 = vunpack.c.h.b16 %v121
    %v279 = vunpack.c.l.b16 %v122
    %v280 = vunpack.c.l.b16 %v123
    %v281 = vunpack.c.h.b16 %v123
    %v282 = vunpack.c.l.b16 %v124
    %v283 = vunpack.c.h.b16 %v124
    %v284 = vunpack.c.l.b16 %v125
    %v285 = vunpack.c.l.b16 %v126
    %v286 = vunpack.c.h.b16 %v126
    %v287 = vunpack.c.l.b16 %v127
    %v288 = vunpack.c.h.b16 %v127
    %v289 = vunpack.c.l.b16 %v128
    %v290 = vunpack.c.l.b16 %v129
    %v291 = vunpack.c.h.b16 %v129
    %v292 = vunpack.c.l.b16 %v130
    %v293 = vunpack.c.h.b16 %v130
    %v294 = vunpack.c.l.b16 %v131
    %v295 = vunpack.c.l.b16 %v132
    %v296 = vunpack.c.h.b16 %v132
    %v297 = vunpack.c.l.b16 %v133
    %v298 = vunpack.c.h.b16 %v133
    %v299 = vunpack.c.l.b16 %v134
    %v300 = vunpack.c.l.b16 %v135
    %v301 = vunpack.c.h.b16 %v135
    %v302 = vunpack.c.l.b16 %v136
    %v303 = vunpack.c.h.b16 %v136
    %v304 = vunpack.c.l.b16 %v137
    %v305 = vunpack.c.l.b16 %v138
    %v306 = vunpack.c.h.b16 %v138
    %v307 = vunpack.c.l.b16 %v139
    %v308 = vunpack.c.h.b16 %v139
    %v309 = vunpack.c.l.b16 %v140
    %v310 = vunpack.c.l.b16 %v141
    %v311 = vunpack.c.h.b16 %v141
    %v312 = vunpack.c.l.b16 %v142
    %v313 = vunpack.c.h.b16 %v142
    %v314 = vunpack.c.l.b16 %v143
    %v315 = vunpack.c.l.b16 %v144
    %v316 = vunpack.c.h.b16 %v144
    %v317 = vunpack.c.l.b16 %v145
    %v318 = vunpack.c.h.b16 %v145
    %v319 = vunpack.c.l.b16 %v146
    %v320 = vunpack.c.l.b16 %v147
    %v321 = vunpack.c.h.b16 %v147
    %v322 = vunpack.c.l.b16 %v148
    %v323 = vunpack.c.h.b16 %v148
    %v324 = vunpack.c.l.b16 %v149
    %v325 = vunpack.c.l.b16 %v150
    %v326 = vunpack.c.h.b16 %v150
    %v327 = vunpack.c.l.b16 %v151
    %v328 = vunpack.c.h.b16 %v151
    %v329 = vunpack.c.l.b16 %v152
    %v330 = vunpack.c.l.b16 %v153
    %v331 = vunpack.c.h.b16 %v153
    %v332 = vunpack.c.l.b16 %v154
    %v333 = vunpack.c.h.b16 %v154
    %v334 = vunpack.c.l.b16 %v155
    %v335 = vpack.c.b16 %v245, %v240
    %v336 = vpack.c.b16 %v246, %v241
    %v337 = vpack.c.b16 %v247, %v242
    %v338 = vpack.c.b16 %v248, %v243
    %v339 = vpack.c.b16 %v249, %v244
    %v340 = vpack.c.b16 %v255, %v250
    %v341 = vpack.c.b16 %v256, %v251
    %v342 = vpack.c.b16 %v257, %v252
    %v343 = vpack.c.b16 %v258, %v253
    %v344 = vpack.c.b16 %v259, %v254
    %v345 = vpack.c.b16 %v265, %v260
    %v346 = vpack.c.b16 %v266, %v261
    %v347 = vpack.c.b16 %v267, %v262
    %v348 = vpack.c.b16 %v268, %v263
    %v349 = vpack.c.b16 %v269, %v264
    %v350 = vpack.c.b16 %v275, %v270
    %v351 = vpack.c.b16 %v276, %v271
    %v352 = vpack.c.b16 %v277, %v272
    %v353 = vpack.c.b16 %v278, %v273
    %v354 = vpack.c.b16 %v279, %v274
    %v355 = vpack.c.b16 %v285, %v280
    %v356 = vpack.c.b16 %v286, %v281
    %v357 = vpack.c.b16 %v287, %v282
    %v358 = vpack.c.b16 %v288, %v283
    %v359 = vpack.c.b16 %v289, %v284
    %v360 = vpack.c.b16 %v295, %v290
    %v361 = vpack.c.b16 %v296, %v291
    %v362 = vpack.c.b16 %v297, %v292
    %v363 = vpack.c.b16 %v298, %v293
    %v364 = vpack.c.b16 %v299, %v294
    %v365 = vpack.c.b16 %v305, %v300
    %v366 = vpack.c.b16 %v306, %v301
    %v367 = vpack.c.b16 %v307, %v302
    %v368 = vpack.c.b16 %v308, %v303
    %v369 = vpack.c.b16 %v309, %v304
    %v370 = vpack.c.b16 %v315, %v310
    %v371 = vpack.c.b16 %v316, %v311
    %v372 = vpack.c.b16 %v317, %v312
    %v373 = vpack.c.b16 %v318, %v313
    %v374 = vpack.c.b16 %v319, %v314
    %v375 = vpack.c.b16 %v325, %v320
    %v376 = vpack.c.b16 %v326, %v321
    %v377 = vpack.c.b16 %v327, %v322
    %v378 = vpack.c.b16 %v328, %v323
    %v379 = vpack.c.b16 %v329, %v324
    %v380 = vpack.c.b16 %v330, %v330
    %v381 = vpack.c.b16 %v331, %v331
    %v382 = vpack.c.b16 %v332, %v332
    %v383 = vpack.c.b16 %v333, %v333
    %v384 = vpack.c.b16 %v334, %v334
    %vm430 = vcmask 154624
    %v432 = vsel %vm430, %v92, 0
    %v435 = vsel %vm430, %v94, 0
    %v438 = vsel %vm430, %v96, 0
    %v441 = vsel %vm430, %v98, 0
    %vm443 = vcmask 1040384
    %vm444 = vcmask 1041408
    %v445 = vsel %vm443, 4294967295, 65535
    %v446 = vsel %vm444, %v445, 0
    %v448 = vand.u32 %v380, %v446
    %v451 = vand.u32 %v381, %v446
    %v454 = vand.u32 %v382, %v446
    %v457 = vand.u32 %v383, %v446
    %v460 = vand.u32 %v384, %v446
    %462 = vmatprep.subr.bf16.mxu0 %v336
    %463 = vmatpush1.bf16.msra.mxu0 %v335
    %464 = vmatprep.subr.bf16.mxu0 %v341
    %465 = vmatpush1.bf16.msra.mxu0 %v340
    %466 = vmatprep.subr.bf16.mxu0 %v346
    %467 = vmatpush1.bf16.msra.mxu0 %v345
    %468 = vmatprep.subr.bf16.mxu0 %v351
    %469 = vmatpush1.bf16.msra.mxu0 %v350
    %470 = vmatprep.subr.bf16.mxu0 %v356
    %471 = vmatpush1.bf16.msra.mxu0 %v355
    %472 = vmatprep.subr.bf16.mxu0 %v361
    %473 = vmatpush1.bf16.msra.mxu0 %v360
    %474 = vmatprep.subr.bf16.mxu0 %v366
    %475 = vmatpush1.bf16.msra.mxu0 %v365
    %476 = vmatprep.subr.bf16.mxu0 %v371
    %477 = vmatpush1.bf16.msra.mxu0 %v370
    %478 = vmatprep.subr.bf16.mxu0 %v376
    %479 = vmatpush1.bf16.msra.mxu0 %v375
    %480 = vmatprep.subr.bf16.mxu0 %v451
    %481 = vmatpush1.bf16.msra.mxu0 %v448
    %482 = vmatprep.subr.bf16.mxu0 0
    %483 = vmatpush1.bf16.msra.mxu0 0
    %484 = vmatprep.subr.bf16.mxu0 0
    %485 = vmatpush1.bf16.msra.mxu0 0
    %486 = vmatprep.subr.bf16.mxu0 0
    %487 = vmatpush1.bf16.msra.mxu0 0
    %488 = vmatprep.subr.bf16.mxu0 0
    %489 = vmatpush1.bf16.msra.mxu0 0
    %490 = vmatprep.subr.bf16.mxu0 0
    %491 = vmatpush1.bf16.msra.mxu0 0
    %492 = vmatprep.subr.bf16.mxu0 0
    %493 = vmatpush1.bf16.msra.mxu0 0
    %494 = vmatprep.mubr.bf16.mxu0 %v432
    %495 = vmatmul.mubr.bf16.gmra.mrb[0].mxu0 %v91
    %v496 = vpop.f32.mrb[0].mxu0
    %v497 = vadd.f32 %v161, %v496
    %v498 = vpop.f32.mrb[0].mxu0
    %v499 = vadd.f32 %v165, %v498
    %v500 = vpop.f32.mrb[0].mxu0
    %v501 = vadd.f32 %v161, %v500
    %v502 = vpop.f32.mrb[0].mxu0
    %v503 = vadd.f32 %v165, %v502
    %504 = vmatprep.mubr.bf16.mxu0 %v435
    %505 = vmatmul.mubr.bf16.gmra.mrb[0].mxu0 %v93
    %v506 = vpop.f32.mrb[0].mxu0
    %v507 = vadd.f32 %v161, %v506
    %v508 = vpop.f32.mrb[0].mxu0
    %v509 = vadd.f32 %v165, %v508
    %v510 = vpop.f32.mrb[0].mxu0
    %v511 = vadd.f32 %v161, %v510
    %v512 = vpop.f32.mrb[0].mxu0
    %v513 = vadd.f32 %v165, %v512
    %514 = vmatprep.mubr.bf16.mxu0 %v438
    %515 = vmatmul.mubr.bf16.gmra.mrb[0].mxu0 %v95
    %v516 = vpop.f32.mrb[0].mxu0
    %v517 = vadd.f32 %v161, %v516
    %v518 = vpop.f32.mrb[0].mxu0
    %v519 = vadd.f32 %v165, %v518
    %v520 = vpop.f32.mrb[0].mxu0
    %v521 = vadd.f32 %v161, %v520
    %v522 = vpop.f32.mrb[0].mxu0
    %v523 = vadd.f32 %v165, %v522
    %524 = vmatprep.mubr.bf16.mxu0 %v441
    %525 = vmatmul.mubr.bf16.gmra.mrb[0].mxu0 %v97
    %v526 = vpop.f32.mrb[0].mxu0
    %v527 = vadd.f32 %v161, %v526
    %v528 = vpop.f32.mrb[0].mxu0
    %v529 = vadd.f32 %v165, %v528
    %v530 = vpop.f32.mrb[0].mxu0
    %v531 = vadd.f32 %v161, %v530
    %v532 = vpop.f32.mrb[0].mxu0
    %v533 = vadd.f32 %v165, %v532
    %534 = vdwg.mxu0
    %535 = vmatprep.subr.bf16.mxu0 %v338
    %536 = vmatpush1.bf16.msra.mxu0 %v337
    %537 = vmatprep.subr.bf16.mxu0 %v343
    %538 = vmatpush1.bf16.msra.mxu0 %v342
    %539 = vmatprep.subr.bf16.mxu0 %v348
    %540 = vmatpush1.bf16.msra.mxu0 %v347
    %541 = vmatprep.subr.bf16.mxu0 %v353
    %542 = vmatpush1.bf16.msra.mxu0 %v352
    %543 = vmatprep.subr.bf16.mxu0 %v358
    %544 = vmatpush1.bf16.msra.mxu0 %v357
    %545 = vmatprep.subr.bf16.mxu0 %v363
    %546 = vmatpush1.bf16.msra.mxu0 %v362
    %547 = vmatprep.subr.bf16.mxu0 %v368
    %548 = vmatpush1.bf16.msra.mxu0 %v367
    %549 = vmatprep.subr.bf16.mxu0 %v373
    %550 = vmatpush1.bf16.msra.mxu0 %v372
    %551 = vmatprep.subr.bf16.mxu0 %v378
    %552 = vmatpush1.bf16.msra.mxu0 %v377
    %553 = vmatprep.subr.bf16.mxu0 %v457
    %554 = vmatpush1.bf16.msra.mxu0 %v454
    %555 = vmatprep.subr.bf16.mxu0 0
    %556 = vmatpush1.bf16.msra.mxu0 0
    %557 = vmatprep.subr.bf16.mxu0 0
    %558 = vmatpush1.bf16.msra.mxu0 0
    %559 = vmatprep.subr.bf16.mxu0 0
    %560 = vmatpush1.bf16.msra.mxu0 0
    %561 = vmatprep.subr.bf16.mxu0 0
    %562 = vmatpush1.bf16.msra.mxu0 0
    %563 = vmatprep.subr.bf16.mxu0 0
    %564 = vmatpush1.bf16.msra.mxu0 0
    %565 = vmatprep.subr.bf16.mxu0 0
    %566 = vmatpush1.bf16.msra.mxu0 0
    %567 = vmatprep.mubr.bf16.mxu0 %v432
    %568 = vmatmul.mubr.bf16.gmra.mrb[0].mxu0 %v91
    %v569 = vpop.f32.mrb[0].mxu0
    %v570 = vadd.f32 %v169, %v569
    %v571 = vpop.f32.mrb[0].mxu0
    %v572 = vadd.f32 %v173, %v571
    %v573 = vpop.f32.mrb[0].mxu0
    %v574 = vadd.f32 %v169, %v573
    %v575 = vpop.f32.mrb[0].mxu0
    %v576 = vadd.f32 %v173, %v575
    %577 = vmatprep.mubr.bf16.mxu0 %v435
    %578 = vmatmul.mubr.bf16.gmra.mrb[0].mxu0 %v93
    %v579 = vpop.f32.mrb[0].mxu0
    %v580 = vadd.f32 %v169, %v579
    %v581 = vpop.f32.mrb[0].mxu0
    %v582 = vadd.f32 %v173, %v581
    %v583 = vpop.f32.mrb[0].mxu0
    %v584 = vadd.f32 %v169, %v583
    %v585 = vpop.f32.mrb[0].mxu0
    %v586 = vadd.f32 %v173, %v585
    %587 = vmatprep.mubr.bf16.mxu0 %v438
    %588 = vmatmul.mubr.bf16.gmra.mrb[0].mxu0 %v95
    %v589 = vpop.f32.mrb[0].mxu0
    %v590 = vadd.f32 %v169, %v589
    %v591 = vpop.f32.mrb[0].mxu0
    %v592 = vadd.f32 %v173, %v591
    %v593 = vpop.f32.mrb[0].mxu0
    %v594 = vadd.f32 %v169, %v593
    %v595 = vpop.f32.mrb[0].mxu0
    %v596 = vadd.f32 %v173, %v595
    %597 = vmatprep.mubr.bf16.mxu0 %v441
    %598 = vmatmul.mubr.bf16.gmra.mrb[0].mxu0 %v97
    %v599 = vpop.f32.mrb[0].mxu0
    %v600 = vadd.f32 %v169, %v599
    %v601 = vpop.f32.mrb[0].mxu0
    %v602 = vadd.f32 %v173, %v601
    %v603 = vpop.f32.mrb[0].mxu0
    %v604 = vadd.f32 %v169, %v603
    %v605 = vpop.f32.mrb[0].mxu0
    %v606 = vadd.f32 %v173, %v605
    %607 = vdwg.mxu0
    %608 = vmatprep.subr.bf16.mxu0 0
    %609 = vmatpush1.bf16.msra.mxu0 %v339
    %610 = vmatprep.subr.bf16.mxu0 0
    %611 = vmatpush1.bf16.msra.mxu0 %v344
    %612 = vmatprep.subr.bf16.mxu0 0
    %613 = vmatpush1.bf16.msra.mxu0 %v349
    %614 = vmatprep.subr.bf16.mxu0 0
    %615 = vmatpush1.bf16.msra.mxu0 %v354
    %616 = vmatprep.subr.bf16.mxu0 0
    %617 = vmatpush1.bf16.msra.mxu0 %v359
    %618 = vmatprep.subr.bf16.mxu0 0
    %619 = vmatpush1.bf16.msra.mxu0 %v364
    %620 = vmatprep.subr.bf16.mxu0 0
    %621 = vmatpush1.bf16.msra.mxu0 %v369
    %622 = vmatprep.subr.bf16.mxu0 0
    %623 = vmatpush1.bf16.msra.mxu0 %v374
    %624 = vmatprep.subr.bf16.mxu0 0
    %625 = vmatpush1.bf16.msra.mxu0 %v379
    %626 = vmatprep.subr.bf16.mxu0 0
    %627 = vmatpush1.bf16.msra.mxu0 %v460
    %628 = vmatprep.subr.bf16.mxu0 0
    %629 = vmatpush1.bf16.msra.mxu0 0
    %630 = vmatprep.subr.bf16.mxu0 0
    %631 = vmatpush1.bf16.msra.mxu0 0
    %632 = vmatprep.subr.bf16.mxu0 0
    %633 = vmatpush1.bf16.msra.mxu0 0
    %634 = vmatprep.subr.bf16.mxu0 0
    %635 = vmatpush1.bf16.msra.mxu0 0
    %636 = vmatprep.subr.bf16.mxu0 0
    %637 = vmatpush1.bf16.msra.mxu0 0
    %638 = vmatprep.subr.bf16.mxu0 0
    %639 = vmatpush1.bf16.msra.mxu0 0
    %640 = vmatprep.mubr.bf16.mxu0 %v432
    %641 = vmatmul.mubr.bf16.gmra.mrb[0].mxu0 %v91
    %v642 = vpop.f32.mrb[0].mxu0
    %v643 = vadd.f32 %v177, %v642
    %v644 = vpop.f32.mrb[0].mxu0
    %v645 = vpop.f32.mrb[0].mxu0
    %v646 = vadd.f32 %v177, %v645
    %v647 = vpop.f32.mrb[0].mxu0
    %648 = vmatprep.mubr.bf16.mxu0 %v435
    %649 = vmatmul.mubr.bf16.gmra.mrb[0].mxu0 %v93
    %v650 = vpop.f32.mrb[0].mxu0
    %v651 = vadd.f32 %v177, %v650
    %v652 = vpop.f32.mrb[0].mxu0
    %v653 = vpop.f32.mrb[0].mxu0
    %v654 = vadd.f32 %v177, %v653
    %v655 = vpop.f32.mrb[0].mxu0
    %656 = vmatprep.mubr.bf16.mxu0 %v438
    %657 = vmatmul.mubr.bf16.gmra.mrb[0].mxu0 %v95
    %v658 = vpop.f32.mrb[0].mxu0
    %v659 = vadd.f32 %v177, %v658
    %v660 = vpop.f32.mrb[0].mxu0
    %v661 = vpop.f32.mrb[0].mxu0
    %v662 = vadd.f32 %v177, %v661
    %v663 = vpop.f32.mrb[0].mxu0
    %664 = vmatprep.mubr.bf16.mxu0 %v441
    %665 = vmatmul.mubr.bf16.gmra.mrb[0].mxu0 %v97
    %v666 = vpop.f32.mrb[0].mxu0
    %v667 = vadd.f32 %v177, %v666
    %v668 = vpop.f32.mrb[0].mxu0
    %v669 = vpop.f32.mrb[0].mxu0
    %v670 = vadd.f32 %v177, %v669
    %v671 = vpop.f32.mrb[0].mxu0
    %672 = vdwg.mxu0
    %v673 = vmax.f32 %v497, 0.0
    %v674 = vmax.f32 %v499, 0.0
    %v675 = vmax.f32 %v570, 0.0
    %v676 = vmax.f32 %v572, 0.0
    %v677 = vmax.f32 %v643, 0.0
    %v678 = vmax.f32 %v501, 0.0
    %v679 = vmax.f32 %v503, 0.0
    %v680 = vmax.f32 %v574, 0.0
    %v681 = vmax.f32 %v576, 0.0
    %v682 = vmax.f32 %v646, 0.0
    %v683 = vmax.f32 %v507, 0.0
    %v684 = vmax.f32 %v509, 0.0
    %v685 = vmax.f32 %v580, 0.0
    %v686 = vmax.f32 %v582, 0.0
    %v687 = vmax.f32 %v651, 0.0
    %v688 = vmax.f32 %v511, 0.0
    %v689 = vmax.f32 %v513, 0.0
    %v690 = vmax.f32 %v584, 0.0
    %v691 = vmax.f32 %v586, 0.0
    %v692 = vmax.f32 %v654, 0.0
    %v693 = vmax.f32 %v517, 0.0
    %v694 = vmax.f32 %v519, 0.0
    %v695 = vmax.f32 %v590, 0.0
    %v696 = vmax.f32 %v592, 0.0
    %v697 = vmax.f32 %v659, 0.0
    %v698 = vmax.f32 %v521, 0.0
    %v699 = vmax.f32 %v523, 0.0
    %v700 = vmax.f32 %v594, 0.0
    %v701 = vmax.f32 %v596, 0.0
    %v702 = vmax.f32 %v662, 0.0
    %v703 = vmax.f32 %v527, 0.0
    %v704 = vmax.f32 %v529, 0.0
    %v705 = vmax.f32 %v600, 0.0
    %v706 = vmax.f32 %v602, 0.0
    %v707 = vmax.f32 %v667, 0.0
    %v708 = vmax.f32 %v531, 0.0
    %v709 = vmax.f32 %v533, 0.0
    %v710 = vmax.f32 %v604, 0.0
    %v711 = vmax.f32 %v606, 0.0
    %v712 = vmax.f32 %v670, 0.0
    %729 = vrot.lane.b32.xlu0 %v674, 112
    %v730 = vpop.permute.xlu0 %729
    %731 = vrot.lane.b32.xlu0 %v675, 112
    %v732 = vpop.permute.xlu0 %731
    %733 = vrot.lane.b32.xlu0 %v679, 112
    %v734 = vpop.permute.xlu0 %733
    %735 = vrot.lane.b32.xlu0 %v680, 112
    %v736 = vpop.permute.xlu0 %735
    %737 = vrot.lane.b32.xlu0 %v684, 112
    %v738 = vpop.permute.xlu0 %737
    %739 = vrot.lane.b32.xlu0 %v685, 112
    %v740 = vpop.permute.xlu0 %739
    %741 = vrot.lane.b32.xlu0 %v689, 112
    %v742 = vpop.permute.xlu0 %741
    %743 = vrot.lane.b32.xlu0 %v690, 112
    %v744 = vpop.permute.xlu0 %743
    %745 = vrot.lane.b32.xlu0 %v694, 112
    %v746 = vpop.permute.xlu0 %745
    %747 = vrot.lane.b32.xlu0 %v695, 112
    %v748 = vpop.permute.xlu0 %747
    %749 = vrot.lane.b32.xlu0 %v699, 112
    %v750 = vpop.permute.xlu0 %749
    %751 = vrot.lane.b32.xlu0 %v700, 112
    %v752 = vpop.permute.xlu0 %751
    %753 = vrot.lane.b32.xlu0 %v704, 112
    %v754 = vpop.permute.xlu0 %753
    %755 = vrot.lane.b32.xlu0 %v705, 112
    %v756 = vpop.permute.xlu0 %755
    %757 = vrot.lane.b32.xlu0 %v709, 112
    %v758 = vpop.permute.xlu0 %757
    %759 = vrot.lane.b32.xlu0 %v710, 112
    %v760 = vpop.permute.xlu0 %759
    %vm761 = vcmask 916480
    %v762 = vsel %vm761, %v730, %v732
    %v763 = vsel %vm761, %v734, %v736
    %v764 = vsel %vm761, %v738, %v740
    %v765 = vsel %vm761, %v742, %v744
    %v766 = vsel %vm761, %v746, %v748
    %v767 = vsel %vm761, %v750, %v752
    %v768 = vsel %vm761, %v754, %v756
    %v769 = vsel %vm761, %v758, %v760
    %v786 = vmax.f32 %v673, %v762
    %v787 = vmax.f32 %v674, %v732
    %v788 = vmax.f32 %v678, %v763
    %v789 = vmax.f32 %v679, %v736
    %v790 = vmax.f32 %v683, %v764
    %v791 = vmax.f32 %v684, %v740
    %v792 = vmax.f32 %v688, %v765
    %v793 = vmax.f32 %v689, %v744
    %v794 = vmax.f32 %v693, %v766
    %v795 = vmax.f32 %v694, %v748
    %v796 = vmax.f32 %v698, %v767
    %v797 = vmax.f32 %v699, %v752
    %v798 = vmax.f32 %v703, %v768
    %v799 = vmax.f32 %v704, %v756
    %v800 = vmax.f32 %v708, %v769
    %v801 = vmax.f32 %v709, %v760
    %818 = vrot.lane.b32.xlu0 %v676, 112
    %v819 = vpop.permute.xlu0 %818
    %820 = vrot.lane.b32.xlu0 %v677, 112
    %v821 = vpop.permute.xlu0 %820
    %822 = vrot.lane.b32.xlu0 %v681, 112
    %v823 = vpop.permute.xlu0 %822
    %824 = vrot.lane.b32.xlu0 %v682, 112
    %v825 = vpop.permute.xlu0 %824
    %826 = vrot.lane.b32.xlu0 %v686, 112
    %v827 = vpop.permute.xlu0 %826
    %828 = vrot.lane.b32.xlu0 %v687, 112
    %v829 = vpop.permute.xlu0 %828
    %830 = vrot.lane.b32.xlu0 %v691, 112
    %v831 = vpop.permute.xlu0 %830
    %832 = vrot.lane.b32.xlu0 %v692, 112
    %v833 = vpop.permute.xlu0 %832
    %834 = vrot.lane.b32.xlu0 %v696, 112
    %v835 = vpop.permute.xlu0 %834
    %836 = vrot.lane.b32.xlu0 %v697, 112
    %v837 = vpop.permute.xlu0 %836
    %838 = vrot.lane.b32.xlu0 %v701, 112
    %v839 = vpop.permute.xlu0 %838
    %840 = vrot.lane.b32.xlu0 %v702, 112
    %v841 = vpop.permute.xlu0 %840
    %842 = vrot.lane.b32.xlu0 %v706, 112
    %v843 = vpop.permute.xlu0 %842
    %844 = vrot.lane.b32.xlu0 %v707, 112
    %v845 = vpop.permute.xlu0 %844
    %846 = vrot.lane.b32.xlu0 %v711, 112
    %v847 = vpop.permute.xlu0 %846
    %848 = vrot.lane.b32.xlu0 %v712, 112
    %v849 = vpop.permute.xlu0 %848
    %v850 = vsel %vm761, %v819, %v821
    %v851 = vsel %vm761, %v823, %v825
    %v852 = vsel %vm761, %v827, %v829
    %v853 = vsel %vm761, %v831, %v833
    %v854 = vsel %vm761, %v835, %v837
    %v855 = vsel %vm761, %v839, %v841
    %v856 = vsel %vm761, %v843, %v845
    %v857 = vsel %vm761, %v847, %v849
    %v874 = vmax.f32 %v675, %v850
    %v875 = vmax.f32 %v676, %v821
    %v876 = vmax.f32 %v680, %v851
    %v877 = vmax.f32 %v681, %v825
    %v878 = vmax.f32 %v685, %v852
    %v879 = vmax.f32 %v686, %v829
    %v880 = vmax.f32 %v690, %v853
    %v881 = vmax.f32 %v691, %v833
    %v882 = vmax.f32 %v695, %v854
    %v883 = vmax.f32 %v696, %v837
    %v884 = vmax.f32 %v700, %v855
    %v885 = vmax.f32 %v701, %v841
    %v886 = vmax.f32 %v705, %v856
    %v887 = vmax.f32 %v706, %v845
    %v888 = vmax.f32 %v710, %v857
    %v889 = vmax.f32 %v711, %v849
    %906 = vrot.lane.b32.xlu0 %v874, 96
    %v907 = vpop.permute.xlu0 %906
    %908 = vrot.lane.b32.xlu0 %v875, 96
    %v909 = vpop.permute.xlu0 %908
    %910 = vrot.lane.b32.xlu0 %v876, 96
    %v911 = vpop.permute.xlu0 %910
    %912 = vrot.lane.b32.xlu0 %v877, 96
    %v913 = vpop.permute.xlu0 %912
    %914 = vrot.lane.b32.xlu0 %v878, 96
    %v915 = vpop.permute.xlu0 %914
    %916 = vrot.lane.b32.xlu0 %v879, 96
    %v917 = vpop.permute.xlu0 %916
    %918 = vrot.lane.b32.xlu0 %v880, 96
    %v919 = vpop.permute.xlu0 %918
    %920 = vrot.lane.b32.xlu0 %v881, 96
    %v921 = vpop.permute.xlu0 %920
    %922 = vrot.lane.b32.xlu0 %v882, 96
    %v923 = vpop.permute.xlu0 %922
    %924 = vrot.lane.b32.xlu0 %v883, 96
    %v925 = vpop.permute.xlu0 %924
    %926 = vrot.lane.b32.xlu0 %v884, 96
    %v927 = vpop.permute.xlu0 %926
    %928 = vrot.lane.b32.xlu0 %v885, 96
    %v929 = vpop.permute.xlu0 %928
    %930 = vrot.lane.b32.xlu0 %v886, 96
    %v931 = vpop.permute.xlu0 %930
    %932 = vrot.lane.b32.xlu0 %v887, 96
    %v933 = vpop.permute.xlu0 %932
    %934 = vrot.lane.b32.xlu0 %v888, 96
    %v935 = vpop.permute.xlu0 %934
    %936 = vrot.lane.b32.xlu0 %v889, 96
    %v937 = vpop.permute.xlu0 %936
    %vm938 = vcmask 785408
    %v939 = vsel %vm938, %v907, %v909
    %v940 = vsel %vm938, %v911, %v913
    %v941 = vsel %vm938, %v915, %v917
    %v942 = vsel %vm938, %v919, %v921
    %v943 = vsel %vm938, %v923, %v925
    %v944 = vsel %vm938, %v927, %v929
    %v945 = vsel %vm938, %v931, %v933
    %v946 = vsel %vm938, %v935, %v937
    %v963 = vmax.f32 %v786, %v939
    %v964 = vmax.f32 %v787, %v909
    %v965 = vmax.f32 %v788, %v940
    %v966 = vmax.f32 %v789, %v913
    %v967 = vmax.f32 %v790, %v941
    %v968 = vmax.f32 %v791, %v917
    %v969 = vmax.f32 %v792, %v942
    %v970 = vmax.f32 %v793, %v921
    %v971 = vmax.f32 %v794, %v943
    %v972 = vmax.f32 %v795, %v925
    %v973 = vmax.f32 %v796, %v944
    %v974 = vmax.f32 %v797, %v929
    %v975 = vmax.f32 %v798, %v945
    %v976 = vmax.f32 %v799, %v933
    %v977 = vmax.f32 %v800, %v946
    %v978 = vmax.f32 %v801, %v937
    %v979 = vpack.c.bf16 %v965, %v963
    %v980 = vpack.c.bf16 %v966, %v964
    %v981 = vpack.c.bf16 %v969, %v967
    %v982 = vpack.c.bf16 %v970, %v968
    %v983 = vpack.c.bf16 %v973, %v971
    %v984 = vpack.c.bf16 %v974, %v972
    %v985 = vpack.c.bf16 %v977, %v975
    %v986 = vpack.c.bf16 %v978, %v976
    %v987 = vld [vmem:[%s5] sm:$0xf]
    %v988 = vld [vmem:[%s5 + $0x4] sm:$0xf]
    %v989 = vld [vmem:[%s5 + $0x8] sm:$0xf]
    %v990 = vld [vmem:[%s5 + $0xc] sm:$0xf]
    %v991 = vld [vmem:[%s5 + $0x10] sm:$0xf]
    %v992 = vld [vmem:[%s5 + $0x14] sm:$0xf]
    %v993 = vld [vmem:[%s5 + $0x18] sm:$0xf]
    %v994 = vld [vmem:[%s5 + $0x1c] sm:$0xf]
    %v995 = vld [vmem:[%s5 + $0x20] sm:$0xf]
    %v996 = vld [vmem:[%s5 + $0x24] sm:$0xf]
    %v997 = vld [vmem:[%s5 + $0x28] sm:$0xf]
    %v998 = vld [vmem:[%s5 + $0x2c] sm:$0xf]
    %v999 = vld [vmem:[%s5 + $0x30] sm:$0xf]
    %v1000 = vld [vmem:[%s5 + $0x34] sm:$0xf]
    %v1001 = vld [vmem:[%s5 + $0x38] sm:$0xf]
    %v1002 = vld [vmem:[%s5 + $0x3c] sm:$0xf]
    %v1003 = vld [vmem:[%s5 + $0x40] sm:$0xf]
    %v1004 = vld [vmem:[%s5 + $0x44] sm:$0xf]
    %v1005 = vld [vmem:[%s6] sm:$0x1]
    %v1007 = vlaneseq
    %v1008 = vshrl.u32 %v1007, 7
    %v1009 = vsub.s32 0, %v1008
    %v1010 = vrot.slane %v1005, %v1009
    %v1030 = vunpack.c.l.b16 %v987
    %v1031 = vunpack.c.l.b16 %v988
    %v1032 = vunpack.c.l.b16 %v989
    %v1033 = vunpack.c.l.b16 %v990
    %v1034 = vunpack.c.l.b16 %v991
    %v1035 = vunpack.c.l.b16 %v992
    %v1036 = vunpack.c.l.b16 %v993
    %v1037 = vunpack.c.l.b16 %v994
    %v1038 = vunpack.c.l.b16 %v995
    %v1039 = vunpack.c.l.b16 %v996
    %v1040 = vunpack.c.l.b16 %v997
    %v1041 = vunpack.c.l.b16 %v998
    %v1042 = vunpack.c.l.b16 %v999
    %v1043 = vunpack.c.l.b16 %v1000
    %v1044 = vunpack.c.l.b16 %v1001
    %v1045 = vunpack.c.l.b16 %v1002
    %v1046 = vunpack.c.l.b16 %v1003
    %v1047 = vunpack.c.l.b16 %v1004
    %v1048 = vpack.c.b16 %v1031, %v1030
    %v1049 = vpack.c.b16 %v1033, %v1032
    %v1050 = vpack.c.b16 %v1035, %v1034
    %v1051 = vpack.c.b16 %v1037, %v1036
    %v1052 = vpack.c.b16 %v1039, %v1038
    %v1053 = vpack.c.b16 %v1041, %v1040
    %v1054 = vpack.c.b16 %v1043, %v1042
    %v1055 = vpack.c.b16 %v1045, %v1044
    %v1056 = vpack.c.b16 %v1047, %v1046
    %vm1066 = vcmask 130048
    %v1068 = vsel %vm1066, %v980, 0
    %v1071 = vsel %vm1066, %v982, 0
    %v1074 = vsel %vm1066, %v984, 0
    %v1077 = vsel %vm1066, %v986, 0
    %1079 = vmatprep.subr.bf16.mxu0 0
    %1080 = vmatpush1.bf16.msra.mxu0 %v1048
    %1081 = vmatprep.subr.bf16.mxu0 0
    %1082 = vmatpush1.bf16.msra.mxu0 %v1049
    %1083 = vmatprep.subr.bf16.mxu0 0
    %1084 = vmatpush1.bf16.msra.mxu0 %v1050
    %1085 = vmatprep.subr.bf16.mxu0 0
    %1086 = vmatpush1.bf16.msra.mxu0 %v1051
    %1087 = vmatprep.subr.bf16.mxu0 0
    %1088 = vmatpush1.bf16.msra.mxu0 %v1052
    %1089 = vmatprep.subr.bf16.mxu0 0
    %1090 = vmatpush1.bf16.msra.mxu0 %v1053
    %1091 = vmatprep.subr.bf16.mxu0 0
    %1092 = vmatpush1.bf16.msra.mxu0 %v1054
    %1093 = vmatprep.subr.bf16.mxu0 0
    %1094 = vmatpush1.bf16.msra.mxu0 %v1055
    %1095 = vmatprep.subr.bf16.mxu0 0
    %1096 = vmatpush1.bf16.msra.mxu0 %v1056
    %1097 = vmatprep.subr.bf16.mxu0 0
    %1098 = vmatpush1.bf16.msra.mxu0 0
    %1099 = vmatprep.subr.bf16.mxu0 0
    %1100 = vmatpush1.bf16.msra.mxu0 0
    %1101 = vmatprep.subr.bf16.mxu0 0
    %1102 = vmatpush1.bf16.msra.mxu0 0
    %1103 = vmatprep.subr.bf16.mxu0 0
    %1104 = vmatpush1.bf16.msra.mxu0 0
    %1105 = vmatprep.subr.bf16.mxu0 0
    %1106 = vmatpush1.bf16.msra.mxu0 0
    %1107 = vmatprep.subr.bf16.mxu0 0
    %1108 = vmatpush1.bf16.msra.mxu0 0
    %1109 = vmatprep.subr.bf16.mxu0 0
    %1110 = vmatpush1.bf16.msra.mxu0 0
    %1111 = vmatprep.mubr.bf16.mxu0 %v1068
    %1112 = vmatmul.mubr.bf16.gmra.mrb[0].mxu0 %v979
    %v1113 = vpop.f32.mrb[0].mxu0
    %v1114 = vadd.f32 %v1010, %v1113
    %v1115 = vpop.f32.mrb[0].mxu0
    %v1116 = vpop.f32.mrb[0].mxu0
    %v1117 = vadd.f32 %v1010, %v1116
    %v1118 = vpop.f32.mrb[0].mxu0
    %1119 = vmatprep.mubr.bf16.mxu0 %v1071
    %1120 = vmatmul.mubr.bf16.gmra.mrb[0].mxu0 %v981
    %v1121 = vpop.f32.mrb[0].mxu0
    %v1122 = vadd.f32 %v1010, %v1121
    %v1123 = vpop.f32.mrb[0].mxu0
    %v1124 = vpop.f32.mrb[0].mxu0
    %v1125 = vadd.f32 %v1010, %v1124
    %v1126 = vpop.f32.mrb[0].mxu0
    %1127 = vmatprep.mubr.bf16.mxu0 %v1074
    %1128 = vmatmul.mubr.bf16.gmra.mrb[0].mxu0 %v983
    %v1129 = vpop.f32.mrb[0].mxu0
    %v1130 = vadd.f32 %v1010, %v1129
    %v1131 = vpop.f32.mrb[0].mxu0
    %v1132 = vpop.f32.mrb[0].mxu0
    %v1133 = vadd.f32 %v1010, %v1132
    %v1134 = vpop.f32.mrb[0].mxu0
    %1135 = vmatprep.mubr.bf16.mxu0 %v1077
    %1136 = vmatmul.mubr.bf16.gmra.mrb[0].mxu0 %v985
    %v1137 = vpop.f32.mrb[0].mxu0
    %v1138 = vadd.f32 %v1010, %v1137
    %v1139 = vpop.f32.mrb[0].mxu0
    %v1140 = vpop.f32.mrb[0].mxu0
    %v1141 = vadd.f32 %v1010, %v1140
    %v1142 = vpop.f32.mrb[0].mxu0
    %1143 = vdwg.mxu0
    %v1144 = vmax.f32 %v1114, 0.0
    %v1145 = vmax.f32 %v1117, 0.0
    %v1146 = vmax.f32 %v1122, 0.0
    %v1147 = vmax.f32 %v1125, 0.0
    %v1148 = vmax.f32 %v1130, 0.0
    %v1149 = vmax.f32 %v1133, 0.0
    %v1150 = vmax.f32 %v1138, 0.0
    %v1151 = vmax.f32 %v1141, 0.0
    %v1152 = vpack.c.bf16 %v1145, %v1144
    %v1153 = vpack.c.bf16 %v1147, %v1146
    %v1154 = vpack.c.bf16 %v1149, %v1148
    %v1155 = vpack.c.bf16 %v1151, %v1150
    %v1156 = vld [vmem:[%s7] sm:$0xf]
    %v1157 = vld [vmem:[%s7 + $0x4] sm:$0xf]
    %v1158 = vld [vmem:[%s7 + $0x8] sm:$0xf]
    %v1159 = vld [vmem:[%s7 + $0xc] sm:$0xf]
    %v1160 = vld [vmem:[%s7 + $0x10] sm:$0xf]
    %v1161 = vld [vmem:[%s7 + $0x14] sm:$0xf]
    %v1162 = vld [vmem:[%s7 + $0x18] sm:$0xf]
    %v1163 = vld [vmem:[%s7 + $0x1c] sm:$0xf]
    %v1164 = vld [vmem:[%s7 + $0x20] sm:$0xf]
    %v1165 = vld [vmem:[%s7 + $0x24] sm:$0xf]
    %v1166 = vld [vmem:[%s7 + $0x28] sm:$0xf]
    %v1167 = vld [vmem:[%s7 + $0x2c] sm:$0xf]
    %v1168 = vld [vmem:[%s7 + $0x30] sm:$0xf]
    %v1169 = vld [vmem:[%s7 + $0x34] sm:$0xf]
    %v1170 = vld [vmem:[%s7 + $0x38] sm:$0xf]
    %v1171 = vld [vmem:[%s7 + $0x3c] sm:$0xf]
    %v1172 = vld [vmem:[%s8] sm:$0x1]
    %v1174 = vlaneseq
    %v1175 = vshrl.u32 %v1174, 7
    %v1176 = vsub.s32 0, %v1175
    %v1177 = vrot.slane %v1172, %v1176
    %v1195 = vunpack.c.l.b16 %v1156
    %v1196 = vunpack.c.l.b16 %v1157
    %v1197 = vunpack.c.l.b16 %v1158
    %v1198 = vunpack.c.l.b16 %v1159
    %v1199 = vunpack.c.l.b16 %v1160
    %v1200 = vunpack.c.l.b16 %v1161
    %v1201 = vunpack.c.l.b16 %v1162
    %v1202 = vunpack.c.l.b16 %v1163
    %v1203 = vunpack.c.l.b16 %v1164
    %v1204 = vunpack.c.l.b16 %v1165
    %v1205 = vunpack.c.l.b16 %v1166
    %v1206 = vunpack.c.l.b16 %v1167
    %v1207 = vunpack.c.l.b16 %v1168
    %v1208 = vunpack.c.l.b16 %v1169
    %v1209 = vunpack.c.l.b16 %v1170
    %v1210 = vunpack.c.l.b16 %v1171
    %v1211 = vpack.c.b16 %v1196, %v1195
    %v1212 = vpack.c.b16 %v1198, %v1197
    %v1213 = vpack.c.b16 %v1200, %v1199
    %v1214 = vpack.c.b16 %v1202, %v1201
    %v1215 = vpack.c.b16 %v1204, %v1203
    %v1216 = vpack.c.b16 %v1206, %v1205
    %v1217 = vpack.c.b16 %v1208, %v1207
    %v1218 = vpack.c.b16 %v1210, %v1209
    %1227 = vmatprep.subr.bf16.mxu0 0
    %1228 = vmatpush1.bf16.msra.mxu0 %v1211
    %1229 = vmatprep.subr.bf16.mxu0 0
    %1230 = vmatpush1.bf16.msra.mxu0 %v1212
    %1231 = vmatprep.subr.bf16.mxu0 0
    %1232 = vmatpush1.bf16.msra.mxu0 %v1213
    %1233 = vmatprep.subr.bf16.mxu0 0
    %1234 = vmatpush1.bf16.msra.mxu0 %v1214
    %1235 = vmatprep.subr.bf16.mxu0 0
    %1236 = vmatpush1.bf16.msra.mxu0 %v1215
    %1237 = vmatprep.subr.bf16.mxu0 0
    %1238 = vmatpush1.bf16.msra.mxu0 %v1216
    %1239 = vmatprep.subr.bf16.mxu0 0
    %1240 = vmatpush1.bf16.msra.mxu0 %v1217
    %1241 = vmatprep.subr.bf16.mxu0 0
    %1242 = vmatpush1.bf16.msra.mxu0 %v1218
    %1243 = vmatprep.subr.bf16.mxu0 0
    %1244 = vmatpush1.bf16.msra.mxu0 0
    %1245 = vmatprep.subr.bf16.mxu0 0
    %1246 = vmatpush1.bf16.msra.mxu0 0
    %1247 = vmatprep.subr.bf16.mxu0 0
    %1248 = vmatpush1.bf16.msra.mxu0 0
    %1249 = vmatprep.subr.bf16.mxu0 0
    %1250 = vmatpush1.bf16.msra.mxu0 0
    %1251 = vmatprep.subr.bf16.mxu0 0
    %1252 = vmatpush1.bf16.msra.mxu0 0
    %1253 = vmatprep.subr.bf16.mxu0 0
    %1254 = vmatpush1.bf16.msra.mxu0 0
    %1255 = vmatprep.subr.bf16.mxu0 0
    %1256 = vmatpush1.bf16.msra.mxu0 0
    %1257 = vmatprep.subr.bf16.mxu0 0
    %1258 = vmatpush1.bf16.msra.mxu0 0
    %1259 = vmatprep.mubr.bf16.mxu0 0
    %1260 = vmatmul.mubr.bf16.gmra.mrb[0].mxu0 %v1152
    %v1261 = vpop.f32.mrb[0].mxu0
    %v1262 = vadd.f32 %v1177, %v1261
    %v1263 = vpop.f32.mrb[0].mxu0
    %v1264 = vpop.f32.mrb[0].mxu0
    %v1265 = vadd.f32 %v1177, %v1264
    %v1266 = vpop.f32.mrb[0].mxu0
    %1267 = vmatprep.mubr.bf16.mxu0 0
    %1268 = vmatmul.mubr.bf16.gmra.mrb[0].mxu0 %v1153
    %v1269 = vpop.f32.mrb[0].mxu0
    %v1270 = vadd.f32 %v1177, %v1269
    %v1271 = vpop.f32.mrb[0].mxu0
    %v1272 = vpop.f32.mrb[0].mxu0
    %v1273 = vadd.f32 %v1177, %v1272
    %v1274 = vpop.f32.mrb[0].mxu0
    %1275 = vmatprep.mubr.bf16.mxu0 0
    %1276 = vmatmul.mubr.bf16.gmra.mrb[0].mxu0 %v1154
    %v1277 = vpop.f32.mrb[0].mxu0
    %v1278 = vadd.f32 %v1177, %v1277
    %v1279 = vpop.f32.mrb[0].mxu0
    %v1280 = vpop.f32.mrb[0].mxu0
    %v1281 = vadd.f32 %v1177, %v1280
    %v1282 = vpop.f32.mrb[0].mxu0
    %1283 = vmatprep.mubr.bf16.mxu0 0
    %1284 = vmatmul.mubr.bf16.gmra.mrb[0].mxu0 %v1155
    %v1285 = vpop.f32.mrb[0].mxu0
    %v1286 = vadd.f32 %v1177, %v1285
    %v1287 = vpop.f32.mrb[0].mxu0
    %v1288 = vpop.f32.mrb[0].mxu0
    %v1289 = vadd.f32 %v1177, %v1288
    %v1290 = vpop.f32.mrb[0].mxu0
    %1291 = vdwg.mxu0
    %v1292 = vmax.f32 %v1262, 0.0
    %v1293 = vmax.f32 %v1265, 0.0
    %v1294 = vmax.f32 %v1270, 0.0
    %v1295 = vmax.f32 %v1273, 0.0
    %v1296 = vmax.f32 %v1278, 0.0
    %v1297 = vmax.f32 %v1281, 0.0
    %v1298 = vmax.f32 %v1286, 0.0
    %v1299 = vmax.f32 %v1289, 0.0
    %v1300 = vpack.c.bf16 %v1293, %v1292
    %v1301 = vpack.c.bf16 %v1295, %v1294
    %v1302 = vpack.c.bf16 %v1297, %v1296
    %v1303 = vpack.c.bf16 %v1299, %v1298
    %v1304 = vld [vmem:[%s1] sm:$0xf]
    %v1305 = vld [vmem:[%s1 + $0x4] sm:$0xf]
    %v1306 = vld [vmem:[%s1 + $0x8] sm:$0xf]
    %v1307 = vld [vmem:[%s1 + $0xc] sm:$0xf]
    %v1308 = vld [vmem:[%s1 + $0x10] sm:$0xf]
    %v1309 = vld [vmem:[%s1 + $0x14] sm:$0xf]
    %v1310 = vld [vmem:[%s1 + $0x18] sm:$0xf]
    %v1311 = vld [vmem:[%s1 + $0x1c] sm:$0xf]
    %v1312 = vld [vmem:[#allocation5] sm:$0xf]
    %v1313 = vld [vmem:[#allocation5 + $0x4] sm:$0xf]
    %v1314 = vld [vmem:[#allocation5 + $0x8] sm:$0xf]
    %v1315 = vld [vmem:[#allocation5 + $0xc] sm:$0xf]
    %v1316 = vld [vmem:[#allocation5 + $0x10] sm:$0xf]
    %v1317 = vld [vmem:[#allocation5 + $0x14] sm:$0xf]
    %v1318 = vld [vmem:[#allocation5 + $0x18] sm:$0xf]
    %v1319 = vld [vmem:[#allocation5 + $0x1c] sm:$0xf]
    %v1328 = vunpack.c.l.b16 %v1304
    %v1329 = vunpack.c.l.b16 %v1305
    %v1330 = vunpack.c.l.b16 %v1306
    %v1331 = vunpack.c.l.b16 %v1307
    %v1332 = vunpack.c.l.b16 %v1308
    %v1333 = vunpack.c.l.b16 %v1309
    %v1334 = vunpack.c.l.b16 %v1310
    %v1335 = vunpack.c.l.b16 %v1311
    %v1336 = vpack.c.b16 %v1329, %v1328
    %v1337 = vpack.c.b16 %v1331, %v1330
    %v1338 = vpack.c.b16 %v1333, %v1332
    %v1339 = vpack.c.b16 %v1335, %v1334
    %1340 = vrot.lane.b32.xlu0 %v1336, 64
    %v1341 = vpop.permute.xlu0 %1340
    %1342 = vrot.lane.b32.xlu0 %v1337, 64
    %v1343 = vpop.permute.xlu0 %1342
    %1344 = vrot.lane.b32.xlu0 %v1338, 64
    %v1345 = vpop.permute.xlu0 %1344
    %1346 = vrot.lane.b32.xlu0 %v1339, 64
    %v1347 = vpop.permute.xlu0 %1346
    %v1356 = vunpack.c.l.b16 %v1312
    %v1357 = vunpack.c.l.b16 %v1313
    %v1358 = vunpack.c.l.b16 %v1314
    %v1359 = vunpack.c.l.b16 %v1315
    %v1360 = vunpack.c.l.b16 %v1316
    %v1361 = vunpack.c.l.b16 %v1317
    %v1362 = vunpack.c.l.b16 %v1318
    %v1363 = vunpack.c.l.b16 %v1319
    %v1364 = vpack.c.b16 %v1357, %v1356
    %v1365 = vpack.c.b16 %v1359, %v1358
    %v1366 = vpack.c.b16 %v1361, %v1360
    %v1367 = vpack.c.b16 %v1363, %v1362
    %1368 = vrot.lane.b32.xlu0 %v1364, 114
    %v1369 = vpop.permute.xlu0 %1368
    %1370 = vrot.lane.b32.xlu0 %v1365, 114
    %v1371 = vpop.permute.xlu0 %1370
    %1372 = vrot.lane.b32.xlu0 %v1366, 114
    %v1373 = vpop.permute.xlu0 %1372
    %1374 = vrot.lane.b32.xlu0 %v1367, 114
    %v1375 = vpop.permute.xlu0 %1374
    %vm1376 = vcmask 523264
    %v1379 = vsel %vm1376, %v1300, %v1341
    %v1382 = vsel %vm1376, %v1301, %v1343
    %v1385 = vsel %vm1376, %v1302, %v1345
    %v1388 = vsel %vm1376, %v1303, %v1347
    %vm1389 = vcmask 932864
    %v1391 = vsel %vm1389, %v1379, %v1369
    %v1393 = vsel %vm1389, %v1382, %v1371
    %v1395 = vsel %vm1389, %v1385, %v1373
    %v1397 = vsel %vm1389, %v1388, %v1375
    %vm1398 = vcmask 703488
    %v1400 = vsel %vm1398, %v1369, 0
    %v1401 = vsel %vm1398, %v1371, 0
    %v1402 = vsel %vm1398, %v1373, 0
    %v1403 = vsel %vm1398, %v1375, 0
    %v1412 = vunpack.c.l.b16 %v1391
    %v1413 = vunpack.c.l.b16 %v1400
    %v1414 = vunpack.c.h.b16 %v1391
    %v1415 = vunpack.c.h.b16 %v1400
    %v1416 = vunpack.c.l.b16 %v1393
    %v1417 = vunpack.c.l.b16 %v1401
    %v1418 = vunpack.c.h.b16 %v1393
    %v1419 = vunpack.c.h.b16 %v1401
    %v1420 = vunpack.c.l.b16 %v1395
    %v1421 = vunpack.c.l.b16 %v1402
    %v1422 = vunpack.c.h.b16 %v1395
    %v1423 = vunpack.c.h.b16 %v1402
    %v1424 = vunpack.c.l.b16 %v1397
    %v1425 = vunpack.c.l.b16 %v1403
    %v1426 = vunpack.c.h.b16 %v1397
    %v1427 = vunpack.c.h.b16 %v1403
    %v1428 = vpack.c.b16 %v1413, %v1412
    %v1429 = vpack.c.b16 %v1415, %v1414
    %v1430 = vpack.c.b16 %v1417, %v1416
    %v1431 = vpack.c.b16 %v1419, %v1418
    %v1432 = vpack.c.b16 %v1421, %v1420
    %v1433 = vpack.c.b16 %v1423, %v1422
    %v1434 = vpack.c.b16 %v1425, %v1424
    %v1435 = vpack.c.b16 %v1427, %v1426
    %1444 = vst [vmem:[#allocation8] sm:$0xff] %v1428
    %1445 = vst [vmem:[#allocation8 + $0x8] sm:$0xff] %v1429
    %1446 = vst [vmem:[#allocation8 + $0x10] sm:$0xff] %v1430
    %1447 = vst [vmem:[#allocation8 + $0x18] sm:$0xff] %v1431
    %1448 = vst [vmem:[#allocation8 + $0x20] sm:$0xff] %v1432
    %1449 = vst [vmem:[#allocation8 + $0x28] sm:$0xff] %v1433
    %1450 = vst [vmem:[#allocation8 + $0x30] sm:$0xff] %v1434
    %1451 = vst [vmem:[#allocation8 + $0x38] sm:$0xff] %v1435
    // Predicated region
    $region50: #{tpu_custom_call.1} parent=1 // pred_check
      _
    $region51: #{tpu_custom_call.1} parent=1 // pred_check_branch
      %1453 = sbr.rel (0) target = $region53
    $region52: #{tpu_custom_call.1} parent=1 // pred_region
      %s1455 = ssub.s32 1024, 1024
      %1456 = vsyncadd [#allocation4], %s1455
      %s1457 = sshll.u32 [#allocation8], 4
      %s1458 = int_to_ptr.vmem [resolvable:$true] %s1457
      %1463 = dma.vmem_to_hbm [thread:$0]  %s1458, 1024, %s9, [#allocation4], 128, 128, 8
    $region53: #{tpu_custom_call.1} parent=1 // pred_fallthru
      _
    // Predicated region
    $region54: #{tpu_custom_call.1} parent=1 // pred_check
      _
    $region55: #{tpu_custom_call.1} parent=1 // pred_check_branch
      %1465 = sbr.rel (0) target = $region57
    $region56: #{tpu_custom_call.1} parent=1 // pred_region
      %1466 = dma.done [#allocation4], 1024
    $region57: #{tpu_custom_call.1} parent=1 // pred_fallthru
      _
    %1467 = vsyncpa [#allocation3], 1
    %1468 = vsyncpa [#allocation6], 1
    %1469 = vsyncpa [#allocation4], 1

</llo_original>
